<compile_context>
chip_gen: v6e
topology: v6e:2x2x1
jax: 0.10.0
libtpu: 0.0.40
codegen_flags: <defaults>
</compile_context>

<pallas_src>
import functools
import math

import jax
import jax.numpy as jnp
from jax import lax
from jax.experimental import pallas as pl
from jax.experimental.pallas import tpu as pltpu


# ----------------------------- Pallas kernel ------------------------------- #

def _fused_attention_layer_kernel(xq_ref, xk_ref, xv_ref,
                                  wq_ref, bq_ref, wk_ref, bk_ref,
                                  wv_ref, bv_ref, wo_ref, bo_ref,
                                  o_ref, *rest,
                                  n_heads, d_k, d_v, output_attention, mxu_dtype):
    if output_attention:
        attn_ref = rest[0]
        q_s, k_s, v_s, ctx_s = rest[1:]
    else:
        attn_ref = None
        q_s, k_s, v_s, ctx_s = rest

    lt = pl.program_id(1)
    scale = 1.0 / math.sqrt(d_k)

    # ---- Q projection for this L-tile (bf16 MXU operands, f32 accumulation);
    #      1/sqrt(E) folded into Q before the bf16 store.
    xq = xq_ref[0].astype(mxu_dtype)                                  # (tq, d_model)
    q = jnp.dot(xq, wq_ref[...], preferred_element_type=jnp.float32) + bq_ref[...]
    q_s[...] = (q * scale).astype(q_s.dtype)                          # (tq, H*d_k)

    # ---- K/V projections only on the first L-tile of each batch element;
    #      k_s/v_s stay resident in VMEM scratch across the sequential lt axis.
    @pl.when(lt == 0)
    def _():
        xk = xk_ref[0].astype(mxu_dtype)                              # (S, d_model)
        xv = xv_ref[0].astype(mxu_dtype)
        k = jnp.dot(xk, wk_ref[...], preferred_element_type=jnp.float32) + bk_ref[...]
        v = jnp.dot(xv, wv_ref[...], preferred_element_type=jnp.float32) + bv_ref[...]
        k_s[...] = k.astype(k_s.dtype)                                # (S, H*d_k)
        v_s[...] = v.astype(v_s.dtype)                                # (S, H*d_v)

    # ---- Per-head attention.  All per-head data flows ref->ref through VMEM
    #      scratch with *static* column slices; nothing is carried across head
    #      iterations (no accumulator, no live (tq,S) tensors between heads).
    nt_dims = (((1,), (1,)), ((), ()))     # contract last dims: Q @ K^T, no K transpose
    for h in range(n_heads):
        qh = q_s[:, h * d_k:(h + 1) * d_k]                            # (tq, d_k) mxu_dtype
        kh = k_s[:, h * d_k:(h + 1) * d_k]                            # (S,  d_k)
        vh = v_s[:, h * d_v:(h + 1) * d_v]                            # (S,  d_v)

        s = lax.dot_general(qh, kh, nt_dims,
                            preferred_element_type=jnp.float32)       # (tq, S) f32
        m = jnp.max(s, axis=-1, keepdims=True)                        # f32 softmax math
        p = jnp.exp(s - m)
        denom = jnp.sum(p, axis=-1, keepdims=True)

        if output_attention:
            a = p / denom                                             # exact (returned)
            attn_ref[0, h] = a.astype(attn_ref.dtype)
            oh = jnp.dot(a.astype(mxu_dtype), vh,
                         preferred_element_type=jnp.float32)          # (tq, d_v)
        else:
            # Normalize AFTER A@V: tq*d_v multiplies instead of tq*S.
            oh = jnp.dot(p.astype(mxu_dtype), vh,
                         preferred_element_type=jnp.float32)
            oh = oh * pl.reciprocal(denom, approx=True)               # EUP slot

        ctx_s[:, h * d_v:(h + 1) * d_v] = oh.astype(ctx_s.dtype)

    # ---- Single full-K output projection: concat(heads) @ W_o + b_o.
    out = jnp.dot(ctx_s[...], wo_ref[...],
                  preferred_element_type=jnp.float32) + bo_ref[...]
    o_ref[0] = out.astype(o_ref.dtype)


# ------------------------------ Module wrapper ------------------------------ #

def init_attention_layer_params(key, d_model, n_heads, d_keys=None, d_values=None,
                                dtype=jnp.float32):
    d_keys = d_keys or d_model // n_heads
    d_values = d_values or d_model // n_heads
    ks = jax.random.split(key, 8)

    def lin(kw, kb, d_in, d_out):
        # nn.Linear default init: U(-1/sqrt(d_in), 1/sqrt(d_in)); stored as (in, out)
        bound = 1.0 / math.sqrt(d_in)
        w = jax.random.uniform(kw, (d_in, d_out), dtype, -bound, bound)
        b = jax.random.uniform(kb, (d_out,), dtype, -bound, bound)
        return w, b

    return {
        "q": lin(ks[0], ks[1], d_model, d_keys * n_heads),
        "k": lin(ks[2], ks[3], d_model, d_keys * n_heads),
        "v": lin(ks[4], ks[5], d_model, d_values * n_heads),
        "o": lin(ks[6], ks[7], d_values * n_heads, d_model),
        "n_heads": n_heads,
    }


def attention_layer_forward(params, queries, keys, values, attn_mask=None,
                            tau=None, delta=None, output_attention=False,
                            mxu_dtype=jnp.bfloat16, block_q=256):
    # TODO(synk): attn_mask / tau / delta accepted but ignored
    # (iTransformer FullAttention with mask_flag=False, eval semantics; no dropout).
    B, L, d_model = queries.shape
    _, S, _ = keys.shape
    H = params["n_heads"]

    wq, bq = params["q"]
    wk, bk = params["k"]
    wv, bv = params["v"]
    wo, bo = params["o"]
    d_k = wq.shape[1] // H
    d_v = wv.shape[1] // H

    # Query-dimension tile: whole L when small, else the largest nice divisor.
    tq = L
    if L > block_q:
        for t in (block_q, 128, 64, 32, 16, 8):
            if L % t == 0:
                tq = t
                break
    n_lt = L // tq if L % tq == 0 else 1
    if n_lt == 1:
        tq = L

    # Cast MXU weight operands host-side (once); biases stay f32 for the add.
    wq_c = wq.astype(mxu_dtype)
    wk_c = wk.astype(mxu_dtype)
    wv_c = wv.astype(mxu_dtype)
    wo_c = wo.astype(mxu_dtype)
    bq2 = bq.reshape(1, -1).astype(jnp.float32)
    bk2 = bk.reshape(1, -1).astype(jnp.float32)
    bv2 = bv.reshape(1, -1).astype(jnp.float32)
    bo2 = bo.reshape(1, -1).astype(jnp.float32)

    kernel = functools.partial(
        _fused_attention_layer_kernel,
        n_heads=H, d_k=d_k, d_v=d_v,
        output_attention=output_attention, mxu_dtype=mxu_dtype)

    def rep_spec(shape):
        return pl.BlockSpec(shape, lambda b, lt, nd=len(shape): (0,) * nd)

    in_specs = [
        pl.BlockSpec((1, tq, d_model), lambda b, lt: (b, lt, 0)),   # queries (L-tiled)
        pl.BlockSpec((1, S, d_model), lambda b, lt: (b, 0, 0)),     # keys
        pl.BlockSpec((1, S, d_model), lambda b, lt: (b, 0, 0)),     # values
        rep_spec((d_model, H * d_k)), rep_spec((1, H * d_k)),       # Wq, bq
        rep_spec((d_model, H * d_k)), rep_spec((1, H * d_k)),       # Wk, bk
        rep_spec((d_model, H * d_v)), rep_spec((1, H * d_v)),       # Wv, bv
        rep_spec((H * d_v, d_model)), rep_spec((1, d_model)),       # Wo, bo
    ]

    if output_attention:
        out_shape = (jax.ShapeDtypeStruct((B, L, d_model), queries.dtype),
                     jax.ShapeDtypeStruct((B, H, L, S), jnp.float32))
        out_specs = (pl.BlockSpec((1, tq, d_model), lambda b, lt: (b, lt, 0)),
                     pl.BlockSpec((1, H, tq, S), lambda b, lt: (b, 0, lt, 0)))
    else:
        out_shape = jax.ShapeDtypeStruct((B, L, d_model), queries.dtype)
        out_specs = pl.BlockSpec((1, tq, d_model), lambda b, lt: (b, lt, 0))

    scratch_shapes = [
        pltpu.VMEM((tq, H * d_k), mxu_dtype),   # Q (scaled) for this L-tile
        pltpu.VMEM((S, H * d_k), mxu_dtype),    # K (resident across lt)
        pltpu.VMEM((S, H * d_v), mxu_dtype),    # V (resident across lt)
        pltpu.VMEM((tq, H * d_v), mxu_dtype),   # concat(heads) context
    ]

    # Explicit scoped-VMEM budget sized from the tile plan (headroom for
    # double-buffered activation blocks); clamped to be safe on all chips.
    bpe_in = queries.dtype.itemsize
    bpe_m = jnp.dtype(mxu_dtype).itemsize
    est = 0
    est += 2 * (tq * d_model + 2 * S * d_model) * bpe_in             # activation blocks x2
    est += 2 * (2 * d_model * H * d_k + d_model * H * d_v
                + H * d_v * d_model) * bpe_m                          # weights x2
    est += 2 * (2 * H * d_k + H * d_v + d_model) * 4                  # biases x2
    est += (tq * H * d_k + S * (H * d_k + H * d_v) + tq * H * d_v) * bpe_m  # scratch
    est += 2 * tq * d_model * bpe_in                                  # output block x2
    est += 4 * tq * S * 4                                             # f32 scores/p working set
    if output_attention:
        est += 2 * H * tq * S * 4
    vmem_limit = int(min(max(est * 2, 32 * 1024 * 1024), 64 * 1024 * 1024))

    result = pl.pallas_call(
        kernel,
        out_shape=out_shape,
        grid=(B, n_lt),
        in_specs=in_specs,
        out_specs=out_specs,
        scratch_shapes=scratch_shapes,
        compiler_params=pltpu.CompilerParams(
            dimension_semantics=("parallel", "arbitrary"),
            vmem_limit_bytes=vmem_limit),
    )(queries, keys, values,
      wq_c, bq2, wk_c, bk2, wv_c, bv2, wo_c, bo2)

    if output_attention:
        out, attn = result
        return out, attn
    return result, None


# --------------------------- pure-JAX reference ----------------------------- #

def _reference_forward(params, queries, keys, values):
    B, L, _ = queries.shape
    S = keys.shape[1]
    H = params["n_heads"]
    wq, bq = params["q"]
    wk, bk = params["k"]
    wv, bv = params["v"]
    wo, bo = params["o"]
    hp = lax.Precision.HIGHEST

    q = (jnp.dot(queries, wq, precision=hp) + bq).reshape(B, L, H, -1)
    k = (jnp.dot(keys, wk, precision=hp) + bk).reshape(B, S, H, -1)
    v = (jnp.dot(values, wv, precision=hp) + bv).reshape(B, S, H, -1)
    scale = 1.0 / math.sqrt(q.shape[-1])
    s = jnp.einsum("blhe,bshe->bhls", q, k, precision=hp) * scale
    a = jax.nn.softmax(s, axis=-1)
    ctx = jnp.einsum("bhls,bshe->blhe", a, v, precision=hp).reshape(B, L, -1)
    return jnp.dot(ctx, wo, precision=hp) + bo, a


# ---------------------------------- main ----------------------------------- #

if __name__ == "__main__":
    B, L, S = 2, 8, 8
    d_model, n_heads = 32, 4

    key = jax.random.PRNGKey(0)
    kp, kq, kk, kv = jax.random.split(key, 4)

    params = init_attention_layer_params(kp, d_model, n_heads)

    queries = jax.random.normal(kq, (B, L, d_model), jnp.float32)
    keys = jax.random.normal(kk, (B, S, d_model), jnp.float32)
    values = jax.random.normal(kv, (B, S, d_model), jnp.float32)

    ref_out, ref_attn = _reference_forward(params, queries, keys, values)

    # 1) Precision check: f32 MXU operands + exact softmax (output_attention path).
    out_f32, attn_f32 = attention_layer_forward(
        params, queries, keys, values, attn_mask=None,
        output_attention=True, mxu_dtype=jnp.float32)
    out_f32 = jax.block_until_ready(out_f32)
    attn_f32 = jax.block_until_ready(attn_f32)
    assert out_f32.shape == (B, L, d_model), out_f32.shape
    assert attn_f32.shape == (B, n_heads, L, S), attn_f32.shape
    assert bool(jnp.all(jnp.isfinite(out_f32)))
    assert bool(jnp.allclose(jnp.sum(attn_f32, axis=-1), 1.0, atol=1e-5))
    assert bool(jnp.allclose(attn_f32, ref_attn, atol=1e-3, rtol=1e-3))
    assert bool(jnp.allclose(out_f32, ref_out, atol=1e-3, rtol=1e-3))

    # 2) Fast path (default): bf16 MXU operands, attn is None (matches PyTorch
    #    FullAttention(output_attention=False)).
    out_bf16, attn_none = attention_layer_forward(
        params, queries, keys, values, attn_mask=None)
    out_bf16 = jax.block_until_ready(out_bf16)
    assert attn_none is None
    assert out_bf16.shape == (B, L, d_model), out_bf16.shape
    assert bool(jnp.all(jnp.isfinite(out_bf16))), "non-finite output"
    assert bool(jnp.allclose(out_bf16, ref_out, atol=5e-2, rtol=5e-2)), \
        "bf16 fast path mismatch vs reference"

    print("KERNEL_OK")
</pallas_src>

<mosaic_0001>
module attributes {stable_mosaic.version = 11 : i64} {
  func.func @_fused_attention_layer_kernel(%arg0: i32, %arg1: i32, %arg2: memref<1x8x32xf32, #tpu.memory_space<vmem>>, %arg3: memref<1x8x32xf32, #tpu.memory_space<vmem>>, %arg4: memref<1x8x32xf32, #tpu.memory_space<vmem>>, %arg5: memref<32x32xf32, #tpu.memory_space<vmem>>, %arg6: memref<1x32xf32, #tpu.memory_space<vmem>>, %arg7: memref<32x32xf32, #tpu.memory_space<vmem>>, %arg8: memref<1x32xf32, #tpu.memory_space<vmem>>, %arg9: memref<32x32xf32, #tpu.memory_space<vmem>>, %arg10: memref<1x32xf32, #tpu.memory_space<vmem>>, %arg11: memref<32x32xf32, #tpu.memory_space<vmem>>, %arg12: memref<1x32xf32, #tpu.memory_space<vmem>>, %arg13: memref<1x8x32xf32, #tpu.memory_space<vmem>>, %arg14: memref<1x4x8x8xf32, #tpu.memory_space<vmem>>, %arg15: memref<8x32xf32, #tpu.memory_space<vmem>>, %arg16: memref<8x32xf32, #tpu.memory_space<vmem>>, %arg17: memref<8x32xf32, #tpu.memory_space<vmem>>, %arg18: memref<8x32xf32, #tpu.memory_space<vmem>>) attributes {dimension_semantics = [#tpu.dimension_semantics<parallel>, #tpu.dimension_semantics<arbitrary>], iteration_bounds = array<i64: 2, 1>, scalar_prefetch = 0 : i64, scratch_operands = 4 : i64, tpu.core_type = #tpu.core_type<tc>, window_params = [{transform_indices = @transform_0, window_bounds = array<i64: 1, 8, 32>}, {transform_indices = @transform_1, window_bounds = array<i64: 1, 8, 32>}, {transform_indices = @transform_2, window_bounds = array<i64: 1, 8, 32>}, {pipeline_mode = #tpu.pipeline_mode<synchronous>, transform_indices = @transform_3, window_bounds = array<i64: 32, 32>}, {pipeline_mode = #tpu.pipeline_mode<synchronous>, transform_indices = @transform_4, window_bounds = array<i64: 1, 32>}, {pipeline_mode = #tpu.pipeline_mode<synchronous>, transform_indices = @transform_5, window_bounds = array<i64: 32, 32>}, {pipeline_mode = #tpu.pipeline_mode<synchronous>, transform_indices = @transform_6, window_bounds = array<i64: 1, 32>}, {pipeline_mode = #tpu.pipeline_mode<synchronous>, transform_indices = @transform_7, window_bounds = array<i64: 32, 32>}, {pipeline_mode = #tpu.pipeline_mode<synchronous>, transform_indices = @transform_8, window_bounds = array<i64: 1, 32>}, {pipeline_mode = #tpu.pipeline_mode<synchronous>, transform_indices = @transform_9, window_bounds = array<i64: 32, 32>}, {pipeline_mode = #tpu.pipeline_mode<synchronous>, transform_indices = @transform_10, window_bounds = array<i64: 1, 32>}, {transform_indices = @transform_11, window_bounds = array<i64: 1, 8, 32>}, {transform_indices = @transform_12, window_bounds = array<i64: 1, 4, 8, 8>}]} {
    %c0 = arith.constant 0 : index
    %c0_0 = arith.constant 0 : index
    %c0_1 = arith.constant 0 : index
    %0 = vector.load %arg2[%c0, %c0_0, %c0_1] : memref<1x8x32xf32, #tpu.memory_space<vmem>>, vector<1x8x32xf32>
    %1 = vector.shape_cast %0 : vector<1x8x32xf32> to vector<8x32xf32>
    %c0_2 = arith.constant 0 : index
    %c0_3 = arith.constant 0 : index
    %2 = vector.load %arg5[%c0_2, %c0_3] : memref<32x32xf32, #tpu.memory_space<vmem>>, vector<32x32xf32>
    %cst = arith.constant dense<0.000000e+00> : vector<8x32xf32>
    %3 = tpu.matmul %1, %2, %cst {dimension_numbers = #tpu.dot_dimension_numbers<[1], [0], [0], [1], [0, 0, 1, 1], [], []>} : vector<8x32xf32>, vector<32x32xf32>, vector<8x32xf32> -> vector<8x32xf32>
    %c0_4 = arith.constant 0 : index
    %c0_5 = arith.constant 0 : index
    %4 = vector.load %arg6[%c0_4, %c0_5] : memref<1x32xf32, #tpu.memory_space<vmem>>, vector<1x32xf32>
    %5 = vector.broadcast %4 : vector<1x32xf32> to vector<8x32xf32>
    %6 = arith.addf %3, %5 : vector<8x32xf32>
    %cst_6 = arith.constant 0.353553385 : f32
    %7 = vector.broadcast %cst_6 : f32 to vector<8x32xf32>
    %8 = arith.mulf %6, %7 : vector<8x32xf32>
    %c0_7 = arith.constant 0 : index
    %c0_8 = arith.constant 0 : index
    %9 = vector.load %arg15[%c0_7, %c0_8] : memref<8x32xf32, #tpu.memory_space<vmem>>, vector<8x32xf32>
    tpu.vector_store %arg15[%c0_7, %c0_8], %8 {strides = array<i32>} : memref<8x32xf32, #tpu.memory_space<vmem>>, vector<8x32xf32>,
    %c0_i32 = arith.constant 0 : i32
    %10 = arith.cmpi eq, %arg1, %c0_i32 : i32
    %11 = arith.extui %10 : i1 to i32
    %c0_i32_9 = arith.constant 0 : i32
    %12 = arith.cmpi ne, %11, %c0_i32_9 : i32
    scf.if %12 {
      %c0_78 = arith.constant 0 : index
      %c0_79 = arith.constant 0 : index
      %c0_80 = arith.constant 0 : index
      %94 = vector.load %arg3[%c0_78, %c0_79, %c0_80] : memref<1x8x32xf32, #tpu.memory_space<vmem>>, vector<1x8x32xf32>
      %95 = vector.shape_cast %94 : vector<1x8x32xf32> to vector<8x32xf32>
      %c0_81 = arith.constant 0 : index
      %c0_82 = arith.constant 0 : index
      %c0_83 = arith.constant 0 : index
      %96 = vector.load %arg4[%c0_81, %c0_82, %c0_83] : memref<1x8x32xf32, #tpu.memory_space<vmem>>, vector<1x8x32xf32>
      %97 = vector.shape_cast %96 : vector<1x8x32xf32> to vector<8x32xf32>
      %c0_84 = arith.constant 0 : index
      %c0_85 = arith.constant 0 : index
      %98 = vector.load %arg7[%c0_84, %c0_85] : memref<32x32xf32, #tpu.memory_space<vmem>>, vector<32x32xf32>
      %cst_86 = arith.constant dense<0.000000e+00> : vector<8x32xf32>
      %99 = tpu.matmul %95, %98, %cst_86 {dimension_numbers = #tpu.dot_dimension_numbers<[1], [0], [0], [1], [0, 0, 1, 1], [], []>} : vector<8x32xf32>, vector<32x32xf32>, vector<8x32xf32> -> vector<8x32xf32>
      %c0_87 = arith.constant 0 : index
      %c0_88 = arith.constant 0 : index
      %100 = vector.load %arg8[%c0_87, %c0_88] : memref<1x32xf32, #tpu.memory_space<vmem>>, vector<1x32xf32>
      %101 = vector.broadcast %100 : vector<1x32xf32> to vector<8x32xf32>
      %102 = arith.addf %99, %101 : vector<8x32xf32>
      %c0_89 = arith.constant 0 : index
      %c0_90 = arith.constant 0 : index
      %103 = vector.load %arg9[%c0_89, %c0_90] : memref<32x32xf32, #tpu.memory_space<vmem>>, vector<32x32xf32>
      %cst_91 = arith.constant dense<0.000000e+00> : vector<8x32xf32>
      %104 = tpu.matmul %97, %103, %cst_91 {dimension_numbers = #tpu.dot_dimension_numbers<[1], [0], [0], [1], [0, 0, 1, 1], [], []>} : vector<8x32xf32>, vector<32x32xf32>, vector<8x32xf32> -> vector<8x32xf32>
      %c0_92 = arith.constant 0 : index
      %c0_93 = arith.constant 0 : index
      %105 = vector.load %arg10[%c0_92, %c0_93] : memref<1x32xf32, #tpu.memory_space<vmem>>, vector<1x32xf32>
      %106 = vector.broadcast %105 : vector<1x32xf32> to vector<8x32xf32>
      %107 = arith.addf %104, %106 : vector<8x32xf32>
      %c0_94 = arith.constant 0 : index
      %c0_95 = arith.constant 0 : index
      %108 = vector.load %arg16[%c0_94, %c0_95] : memref<8x32xf32, #tpu.memory_space<vmem>>, vector<8x32xf32>
      tpu.vector_store %arg16[%c0_94, %c0_95], %102 {strides = array<i32>} : memref<8x32xf32, #tpu.memory_space<vmem>>, vector<8x32xf32>,
      %c0_96 = arith.constant 0 : index
      %c0_97 = arith.constant 0 : index
      %109 = vector.load %arg17[%c0_96, %c0_97] : memref<8x32xf32, #tpu.memory_space<vmem>>, vector<8x32xf32>
      tpu.vector_store %arg17[%c0_96, %c0_97], %107 {strides = array<i32>} : memref<8x32xf32, #tpu.memory_space<vmem>>, vector<8x32xf32>,
    } else {
    }
    %c0_10 = arith.constant 0 : index
    %c0_11 = arith.constant 0 : index
    %13 = vector.load %arg15[%c0_10, %c0_11] : memref<8x32xf32, #tpu.memory_space<vmem>>, vector<8x8xf32>
    %c0_12 = arith.constant 0 : index
    %c0_13 = arith.constant 0 : index
    %14 = vector.load %arg16[%c0_12, %c0_13] : memref<8x32xf32, #tpu.memory_space<vmem>>, vector<8x8xf32>
    %c0_14 = arith.constant 0 : index
    %c0_15 = arith.constant 0 : index
    %15 = vector.load %arg17[%c0_14, %c0_15] : memref<8x32xf32, #tpu.memory_space<vmem>>, vector<8x8xf32>
    %cst_16 = arith.constant dense<0.000000e+00> : vector<8x8xf32>
    %16 = tpu.matmul %13, %14, %cst_16 {dimension_numbers = #tpu.dot_dimension_numbers<[1], [1], [0], [0], [0, 0, 1, 0], [], []>} : vector<8x8xf32>, vector<8x8xf32>, vector<8x8xf32> -> vector<8x8xf32>
    %cst_17 = arith.constant dense<0xFF800000> : vector<8xf32>
    %17 = vector.multi_reduction <maximumf>, %16, %cst_17 [1] : vector<8x8xf32> to vector<8xf32>
    %18 = vector.shape_cast %17 : vector<8xf32> to vector<8x1xf32>
    %19 = vector.broadcast %18 : vector<8x1xf32> to vector<8x8xf32>
    %20 = arith.subf %16, %19 : vector<8x8xf32>
    %21 = math.exp %20 : vector<8x8xf32>
    %cst_18 = arith.constant dense<0.000000e+00> : vector<8xf32>
    %22 = vector.multi_reduction <add>, %21, %cst_18 [1] : vector<8x8xf32> to vector<8xf32>
    %23 = vector.shape_cast %22 : vector<8xf32> to vector<8x1xf32>
    %24 = vector.broadcast %23 : vector<8x1xf32> to vector<8x8xf32>
    %25 = arith.divf %21, %24 : vector<8x8xf32>
    %c0_19 = arith.constant 0 : index
    %c0_20 = arith.constant 0 : index
    %c0_21 = arith.constant 0 : index
    %c0_22 = arith.constant 0 : index
    %26 = vector.load %arg14[%c0_19, %c0_20, %c0_21, %c0_22] : memref<1x4x8x8xf32, #tpu.memory_space<vmem>>, vector<1x1x8x8xf32>
    %27 = vector.shape_cast %26 : vector<1x1x8x8xf32> to vector<8x8xf32>
    %28 = vector.shape_cast %25 : vector<8x8xf32> to vector<1x1x8x8xf32>
    tpu.vector_store %arg14[%c0_19, %c0_20, %c0_21, %c0_22], %28 {strides = array<i32>} : memref<1x4x8x8xf32, #tpu.memory_space<vmem>>, vector<1x1x8x8xf32>,
    %cst_23 = arith.constant dense<0.000000e+00> : vector<8x8xf32>
    %29 = tpu.matmul %25, %15, %cst_23 {dimension_numbers = #tpu.dot_dimension_numbers<[1], [0], [0], [1], [0, 0, 1, 1], [], []>} : vector<8x8xf32>, vector<8x8xf32>, vector<8x8xf32> -> vector<8x8xf32>
    %c0_24 = arith.constant 0 : index
    %c0_25 = arith.constant 0 : index
    %30 = vector.load %arg18[%c0_24, %c0_25] : memref<8x32xf32, #tpu.memory_space<vmem>>, vector<8x8xf32>
    tpu.vector_store %arg18[%c0_24, %c0_25], %29 {strides = array<i32>} : memref<8x32xf32, #tpu.memory_space<vmem>>, vector<8x8xf32>,
    %c0_26 = arith.constant 0 : index
    %c8 = arith.constant 8 : index
    %31 = vector.load %arg15[%c0_26, %c8] : memref<8x32xf32, #tpu.memory_space<vmem>>, vector<8x8xf32>
    %c0_27 = arith.constant 0 : index
    %c8_28 = arith.constant 8 : index
    %32 = vector.load %arg16[%c0_27, %c8_28] : memref<8x32xf32, #tpu.memory_space<vmem>>, vector<8x8xf32>
    %c0_29 = arith.constant 0 : index
    %c8_30 = arith.constant 8 : index
    %33 = vector.load %arg17[%c0_29, %c8_30] : memref<8x32xf32, #tpu.memory_space<vmem>>, vector<8x8xf32>
    %cst_31 = arith.constant dense<0.000000e+00> : vector<8x8xf32>
    %34 = tpu.matmul %31, %32, %cst_31 {dimension_numbers = #tpu.dot_dimension_numbers<[1], [1], [0], [0], [0, 0, 1, 0], [], []>} : vector<8x8xf32>, vector<8x8xf32>, vector<8x8xf32> -> vector<8x8xf32>
    %cst_32 = arith.constant dense<0xFF800000> : vector<8xf32>
    %35 = vector.multi_reduction <maximumf>, %34, %cst_32 [1] : vector<8x8xf32> to vector<8xf32>
    %36 = vector.shape_cast %35 : vector<8xf32> to vector<8x1xf32>
    %37 = vector.broadcast %36 : vector<8x1xf32> to vector<8x8xf32>
    %38 = arith.subf %34, %37 : vector<8x8xf32>
    %39 = math.exp %38 : vector<8x8xf32>
    %cst_33 = arith.constant dense<0.000000e+00> : vector<8xf32>
    %40 = vector.multi_reduction <add>, %39, %cst_33 [1] : vector<8x8xf32> to vector<8xf32>
    %41 = vector.shape_cast %40 : vector<8xf32> to vector<8x1xf32>
    %42 = vector.broadcast %41 : vector<8x1xf32> to vector<8x8xf32>
    %43 = arith.divf %39, %42 : vector<8x8xf32>
    %c0_34 = arith.constant 0 : index
    %c1 = arith.constant 1 : index
    %c0_35 = arith.constant 0 : index
    %c0_36 = arith.constant 0 : index
    %44 = vector.load %arg14[%c0_34, %c1, %c0_35, %c0_36] : memref<1x4x8x8xf32, #tpu.memory_space<vmem>>, vector<1x1x8x8xf32>
    %45 = vector.shape_cast %44 : vector<1x1x8x8xf32> to vector<8x8xf32>
    %46 = vector.shape_cast %43 : vector<8x8xf32> to vector<1x1x8x8xf32>
    tpu.vector_store %arg14[%c0_34, %c1, %c0_35, %c0_36], %46 {strides = array<i32>} : memref<1x4x8x8xf32, #tpu.memory_space<vmem>>, vector<1x1x8x8xf32>,
    %cst_37 = arith.constant dense<0.000000e+00> : vector<8x8xf32>
    %47 = tpu.matmul %43, %33, %cst_37 {dimension_numbers = #tpu.dot_dimension_numbers<[1], [0], [0], [1], [0, 0, 1, 1], [], []>} : vector<8x8xf32>, vector<8x8xf32>, vector<8x8xf32> -> vector<8x8xf32>
    %c0_38 = arith.constant 0 : index
    %c8_39 = arith.constant 8 : index
    %48 = vector.load %arg18[%c0_38, %c8_39] : memref<8x32xf32, #tpu.memory_space<vmem>>, vector<8x8xf32>
    tpu.vector_store %arg18[%c0_38, %c8_39], %47 {strides = array<i32>} : memref<8x32xf32, #tpu.memory_space<vmem>>, vector<8x8xf32>,
    %c0_40 = arith.constant 0 : index
    %c16 = arith.constant 16 : index
    %49 = vector.load %arg15[%c0_40, %c16] : memref<8x32xf32, #tpu.memory_space<vmem>>, vector<8x8xf32>
    %c0_41 = arith.constant 0 : index
    %c16_42 = arith.constant 16 : index
    %50 = vector.load %arg16[%c0_41, %c16_42] : memref<8x32xf32, #tpu.memory_space<vmem>>, vector<8x8xf32>
    %c0_43 = arith.constant 0 : index
    %c16_44 = arith.constant 16 : index
    %51 = vector.load %arg17[%c0_43, %c16_44] : memref<8x32xf32, #tpu.memory_space<vmem>>, vector<8x8xf32>
    %cst_45 = arith.constant dense<0.000000e+00> : vector<8x8xf32>
    %52 = tpu.matmul %49, %50, %cst_45 {dimension_numbers = #tpu.dot_dimension_numbers<[1], [1], [0], [0], [0, 0, 1, 0], [], []>} : vector<8x8xf32>, vector<8x8xf32>, vector<8x8xf32> -> vector<8x8xf32>
    %cst_46 = arith.constant dense<0xFF800000> : vector<8xf32>
    %53 = vector.multi_reduction <maximumf>, %52, %cst_46 [1] : vector<8x8xf32> to vector<8xf32>
    %54 = vector.shape_cast %53 : vector<8xf32> to vector<8x1xf32>
    %55 = vector.broadcast %54 : vector<8x1xf32> to vector<8x8xf32>
    %56 = arith.subf %52, %55 : vector<8x8xf32>
    %57 = math.exp %56 : vector<8x8xf32>
    %cst_47 = arith.constant dense<0.000000e+00> : vector<8xf32>
    %58 = vector.multi_reduction <add>, %57, %cst_47 [1] : vector<8x8xf32> to vector<8xf32>
    %59 = vector.shape_cast %58 : vector<8xf32> to vector<8x1xf32>
    %60 = vector.broadcast %59 : vector<8x1xf32> to vector<8x8xf32>
    %61 = arith.divf %57, %60 : vector<8x8xf32>
    %c0_48 = arith.constant 0 : index
    %c2 = arith.constant 2 : index
    %c0_49 = arith.constant 0 : index
    %c0_50 = arith.constant 0 : index
    %62 = vector.load %arg14[%c0_48, %c2, %c0_49, %c0_50] : memref<1x4x8x8xf32, #tpu.memory_space<vmem>>, vector<1x1x8x8xf32>
    %63 = vector.shape_cast %62 : vector<1x1x8x8xf32> to vector<8x8xf32>
    %64 = vector.shape_cast %61 : vector<8x8xf32> to vector<1x1x8x8xf32>
    tpu.vector_store %arg14[%c0_48, %c2, %c0_49, %c0_50], %64 {strides = array<i32>} : memref<1x4x8x8xf32, #tpu.memory_space<vmem>>, vector<1x1x8x8xf32>,
    %cst_51 = arith.constant dense<0.000000e+00> : vector<8x8xf32>
    %65 = tpu.matmul %61, %51, %cst_51 {dimension_numbers = #tpu.dot_dimension_numbers<[1], [0], [0], [1], [0, 0, 1, 1], [], []>} : vector<8x8xf32>, vector<8x8xf32>, vector<8x8xf32> -> vector<8x8xf32>
    %c0_52 = arith.constant 0 : index
    %c16_53 = arith.constant 16 : index
    %66 = vector.load %arg18[%c0_52, %c16_53] : memref<8x32xf32, #tpu.memory_space<vmem>>, vector<8x8xf32>
    tpu.vector_store %arg18[%c0_52, %c16_53], %65 {strides = array<i32>} : memref<8x32xf32, #tpu.memory_space<vmem>>, vector<8x8xf32>,
    %c0_54 = arith.constant 0 : index
    %c24 = arith.constant 24 : index
    %67 = vector.load %arg15[%c0_54, %c24] : memref<8x32xf32, #tpu.memory_space<vmem>>, vector<8x8xf32>
    %c0_55 = arith.constant 0 : index
    %c24_56 = arith.constant 24 : index
    %68 = vector.load %arg16[%c0_55, %c24_56] : memref<8x32xf32, #tpu.memory_space<vmem>>, vector<8x8xf32>
    %c0_57 = arith.constant 0 : index
    %c24_58 = arith.constant 24 : index
    %69 = vector.load %arg17[%c0_57, %c24_58] : memref<8x32xf32, #tpu.memory_space<vmem>>, vector<8x8xf32>
    %cst_59 = arith.constant dense<0.000000e+00> : vector<8x8xf32>
    %70 = tpu.matmul %67, %68, %cst_59 {dimension_numbers = #tpu.dot_dimension_numbers<[1], [1], [0], [0], [0, 0, 1, 0], [], []>} : vector<8x8xf32>, vector<8x8xf32>, vector<8x8xf32> -> vector<8x8xf32>
    %cst_60 = arith.constant dense<0xFF800000> : vector<8xf32>
    %71 = vector.multi_reduction <maximumf>, %70, %cst_60 [1] : vector<8x8xf32> to vector<8xf32>
    %72 = vector.shape_cast %71 : vector<8xf32> to vector<8x1xf32>
    %73 = vector.broadcast %72 : vector<8x1xf32> to vector<8x8xf32>
    %74 = arith.subf %70, %73 : vector<8x8xf32>
    %75 = math.exp %74 : vector<8x8xf32>
    %cst_61 = arith.constant dense<0.000000e+00> : vector<8xf32>
    %76 = vector.multi_reduction <add>, %75, %cst_61 [1] : vector<8x8xf32> to vector<8xf32>
    %77 = vector.shape_cast %76 : vector<8xf32> to vector<8x1xf32>
    %78 = vector.broadcast %77 : vector<8x1xf32> to vector<8x8xf32>
    %79 = arith.divf %75, %78 : vector<8x8xf32>
    %c0_62 = arith.constant 0 : index
    %c3 = arith.constant 3 : index
    %c0_63 = arith.constant 0 : index
    %c0_64 = arith.constant 0 : index
    %80 = vector.load %arg14[%c0_62, %c3, %c0_63, %c0_64] : memref<1x4x8x8xf32, #tpu.memory_space<vmem>>, vector<1x1x8x8xf32>
    %81 = vector.shape_cast %80 : vector<1x1x8x8xf32> to vector<8x8xf32>
    %82 = vector.shape_cast %79 : vector<8x8xf32> to vector<1x1x8x8xf32>
    tpu.vector_store %arg14[%c0_62, %c3, %c0_63, %c0_64], %82 {strides = array<i32>} : memref<1x4x8x8xf32, #tpu.memory_space<vmem>>, vector<1x1x8x8xf32>,
    %cst_65 = arith.constant dense<0.000000e+00> : vector<8x8xf32>
    %83 = tpu.matmul %79, %69, %cst_65 {dimension_numbers = #tpu.dot_dimension_numbers<[1], [0], [0], [1], [0, 0, 1, 1], [], []>} : vector<8x8xf32>, vector<8x8xf32>, vector<8x8xf32> -> vector<8x8xf32>
    %c0_66 = arith.constant 0 : index
    %c24_67 = arith.constant 24 : index
    %84 = vector.load %arg18[%c0_66, %c24_67] : memref<8x32xf32, #tpu.memory_space<vmem>>, vector<8x8xf32>
    tpu.vector_store %arg18[%c0_66, %c24_67], %83 {strides = array<i32>} : memref<8x32xf32, #tpu.memory_space<vmem>>, vector<8x8xf32>,
    %c0_68 = arith.constant 0 : index
    %c0_69 = arith.constant 0 : index
    %85 = vector.load %arg18[%c0_68, %c0_69] : memref<8x32xf32, #tpu.memory_space<vmem>>, vector<8x32xf32>
    %c0_70 = arith.constant 0 : index
    %c0_71 = arith.constant 0 : index
    %86 = vector.load %arg11[%c0_70, %c0_71] : memref<32x32xf32, #tpu.memory_space<vmem>>, vector<32x32xf32>
    %cst_72 = arith.constant dense<0.000000e+00> : vector<8x32xf32>
    %87 = tpu.matmul %85, %86, %cst_72 {dimension_numbers = #tpu.dot_dimension_numbers<[1], [0], [0], [1], [0, 0, 1, 1], [], []>} : vector<8x32xf32>, vector<32x32xf32>, vector<8x32xf32> -> vector<8x32xf32>
    %c0_73 = arith.constant 0 : index
    %c0_74 = arith.constant 0 : index
    %88 = vector.load %arg12[%c0_73, %c0_74] : memref<1x32xf32, #tpu.memory_space<vmem>>, vector<1x32xf32>
    %89 = vector.broadcast %88 : vector<1x32xf32> to vector<8x32xf32>
    %90 = arith.addf %87, %89 : vector<8x32xf32>
    %c0_75 = arith.constant 0 : index
    %c0_76 = arith.constant 0 : index
    %c0_77 = arith.constant 0 : index
    %91 = vector.load %arg13[%c0_75, %c0_76, %c0_77] : memref<1x8x32xf32, #tpu.memory_space<vmem>>, vector<1x8x32xf32>
    %92 = vector.shape_cast %91 : vector<1x8x32xf32> to vector<8x32xf32>
    %93 = vector.shape_cast %90 : vector<8x32xf32> to vector<1x8x32xf32>
    tpu.vector_store %arg13[%c0_75, %c0_76, %c0_77], %93 {strides = array<i32>} : memref<1x8x32xf32, #tpu.memory_space<vmem>>, vector<1x8x32xf32>,
    return
  }
  func.func @transform_0(%arg0: i32, %arg1: i32) -> (i32, i32, i32) {
    %c0_i32 = arith.constant 0 : i32
    %c0_i32_0 = arith.constant 0 : i32
    return %arg0, %arg1, %c0_i32 : i32, i32, i32
  }
  func.func @transform_1(%arg0: i32, %arg1: i32) -> (i32, i32, i32) {
    %c0_i32 = arith.constant 0 : i32
    %c0_i32_0 = arith.constant 0 : i32
    %c0_i32_1 = arith.constant 0 : i32
    return %arg0, %c0_i32, %c0_i32_0 : i32, i32, i32
  }
  func.func @transform_2(%arg0: i32, %arg1: i32) -> (i32, i32, i32) {
    %c0_i32 = arith.constant 0 : i32
    %c0_i32_0 = arith.constant 0 : i32
    %c0_i32_1 = arith.constant 0 : i32
    return %arg0, %c0_i32, %c0_i32_0 : i32, i32, i32
  }
  func.func @transform_3(%arg0: i32, %arg1: i32) -> (i32, i32) {
    %c0_i32 = arith.constant 0 : i32
    %c0_i32_0 = arith.constant 0 : i32
    %c0_i32_1 = arith.constant 0 : i32
    return %c0_i32, %c0_i32_0 : i32, i32
  }
  func.func @transform_4(%arg0: i32, %arg1: i32) -> (i32, i32) {
    %c0_i32 = arith.constant 0 : i32
    %c0_i32_0 = arith.constant 0 : i32
    %c0_i32_1 = arith.constant 0 : i32
    return %c0_i32, %c0_i32_0 : i32, i32
  }
  func.func @transform_5(%arg0: i32, %arg1: i32) -> (i32, i32) {
    %c0_i32 = arith.constant 0 : i32
    %c0_i32_0 = arith.constant 0 : i32
    %c0_i32_1 = arith.constant 0 : i32
    return %c0_i32, %c0_i32_0 : i32, i32
  }
  func.func @transform_6(%arg0: i32, %arg1: i32) -> (i32, i32) {
    %c0_i32 = arith.constant 0 : i32
    %c0_i32_0 = arith.constant 0 : i32
    %c0_i32_1 = arith.constant 0 : i32
    return %c0_i32, %c0_i32_0 : i32, i32
  }
  func.func @transform_7(%arg0: i32, %arg1: i32) -> (i32, i32) {
    %c0_i32 = arith.constant 0 : i32
    %c0_i32_0 = arith.constant 0 : i32
    %c0_i32_1 = arith.constant 0 : i32
    return %c0_i32, %c0_i32_0 : i32, i32
  }
  func.func @transform_8(%arg0: i32, %arg1: i32) -> (i32, i32) {
    %c0_i32 = arith.constant 0 : i32
    %c0_i32_0 = arith.constant 0 : i32
    %c0_i32_1 = arith.constant 0 : i32
    return %c0_i32, %c0_i32_0 : i32, i32
  }
  func.func @transform_9(%arg0: i32, %arg1: i32) -> (i32, i32) {
    %c0_i32 = arith.constant 0 : i32
    %c0_i32_0 = arith.constant 0 : i32
    %c0_i32_1 = arith.constant 0 : i32
    return %c0_i32, %c0_i32_0 : i32, i32
  }
  func.func @transform_10(%arg0: i32, %arg1: i32) -> (i32, i32) {
    %c0_i32 = arith.constant 0 : i32
    %c0_i32_0 = arith.constant 0 : i32
    %c0_i32_1 = arith.constant 0 : i32
    return %c0_i32, %c0_i32_0 : i32, i32
  }
  func.func @transform_11(%arg0: i32, %arg1: i32) -> (i32, i32, i32) {
    %c0_i32 = arith.constant 0 : i32
    %c0_i32_0 = arith.constant 0 : i32
    return %arg0, %arg1, %c0_i32 : i32, i32, i32
  }
  func.func @transform_12(%arg0: i32, %arg1: i32) -> (i32, i32, i32, i32) {
    %c0_i32 = arith.constant 0 : i32
    %c0_i32_0 = arith.constant 0 : i32
    %c0_i32_1 = arith.constant 0 : i32
    return %arg0, %c0_i32, %arg1, %c0_i32_0 : i32, i32, i32, i32
  }
}

</mosaic_0001>

<llo_original>
// kernel: tpu_custom_call.1
$region0: #{tpu_custom_call.1}
  #allocation0 [shape = 'u32[]', space=smem, size = 0x4, offset = 0x4, fixed_abs, tag = 'smem constant byte address 0x4 - core index']
  #allocation1 [shape = 'u32[144,128]{1,0:T(1,128)}', space=vmem, size = 0x12000, scoped, tag = 'internal scratch']
  #allocation2 [shape = 'f32[8,32]{1,0:T(8,128)}', space=vmem, size = 0x1000, scoped, tag = 'scratch operand']
  #allocation3 [shape = 'f32[8,32]{1,0:T(8,128)}', space=vmem, size = 0x1000, scoped, tag = 'scratch operand']
  #allocation4 [shape = 'f32[8,32]{1,0:T(8,128)}', space=vmem, size = 0x1000, scoped, tag = 'scratch operand']
  #allocation5 [shape = 'f32[8,32]{1,0:T(8,128)}', space=vmem, size = 0x1000, scoped, tag = 'scratch operand']
  %s0 = inlined_call_operand.hbm [shape: f32[2,8,32], index: 0, kind: input, shape index: {}]
  %s1 = inlined_call_operand.hbm [shape: f32[2,8,32], index: 1, kind: input, shape index: {}]
  %s2 = inlined_call_operand.hbm [shape: f32[2,8,32], index: 2, kind: input, shape index: {}]
  %s3 = inlined_call_operand.hbm [shape: f32[32,32], index: 3, kind: input, shape index: {}]
  %s4 = inlined_call_operand.vmem [shape: f32[1,32], index: 4, kind: input, shape index: {}]
  %s5 = inlined_call_operand.hbm [shape: f32[32,32], index: 5, kind: input, shape index: {}]
  %s6 = inlined_call_operand.vmem [shape: f32[1,32], index: 6, kind: input, shape index: {}]
  %s7 = inlined_call_operand.hbm [shape: f32[32,32], index: 7, kind: input, shape index: {}]
  %s8 = inlined_call_operand.vmem [shape: f32[1,32], index: 8, kind: input, shape index: {}]
  %s9 = inlined_call_operand.hbm [shape: f32[32,32], index: 9, kind: input, shape index: {}]
  %s10 = inlined_call_operand.vmem [shape: f32[1,32], index: 10, kind: input, shape index: {}]
  %s11 = inlined_call_operand.hbm [shape: f32[2,8,32], index: 11, kind: output, shape index: {0}]
  %s12 = inlined_call_operand.hbm [shape: f32[2,4,8,8], index: 12, kind: output, shape index: {1}]
  %13 = xla_tuple %s11, %s12
  %s14 = sld [smem:[#allocation0]]
  $region117: #{tpu_custom_call.1} parent=0
    _
  %s16 = ssub.s32 1, %s14
  %s17 = scalar_select 0, %s16, %s14
  $region1: #{tpu_custom_call.1} parent=0
    #allocation6 [shape = 'u8[8192]{0}', space=vmem, size = 0x2000, scoped, tag = 'input window, operand 0']
    #allocation7 [shape = 's32[2]{0}', space=sflag, size = 0x8, scoped, tag = 'scoped memory for tpu_custom_call.1']
    #allocation8 [shape = 's32[2]{0}', space=sflag, size = 0x8, scoped, tag = 'scoped memory for tpu_custom_call.1']
    #allocation9 [shape = 'u8[8192]{0}', space=vmem, size = 0x2000, scoped, tag = 'input window, operand 1']
    #allocation10 [shape = 's32[2]{0}', space=sflag, size = 0x8, scoped, tag = 'scoped memory for tpu_custom_call.1']
    #allocation11 [shape = 'u8[8192]{0}', space=vmem, size = 0x2000, scoped, tag = 'input window, operand 2']
    #allocation12 [shape = 'u8[16384]{0}', space=vmem, size = 0x4000, scoped, tag = 'input window, operand 3, single buffered']
    #allocation13 [shape = 's32[1]{0}', space=sflag, size = 0x4, scoped, tag = 'scoped memory for tpu_custom_call.1']
    #allocation14 [shape = 'u8[16384]{0}', space=vmem, size = 0x4000, scoped, tag = 'input window, operand 5, single buffered']
    #allocation15 [shape = 'u8[16384]{0}', space=vmem, size = 0x4000, scoped, tag = 'input window, operand 7, single buffered']
    #allocation16 [shape = 's32[1]{0}', space=sflag, size = 0x4, scoped, tag = 'scoped memory for tpu_custom_call.1']
    #allocation17 [shape = 'u8[16384]{0}', space=vmem, size = 0x4000, scoped, tag = 'input window, operand 9, single buffered']
    #allocation18 [shape = 'u8[8192]{0}', space=vmem, size = 0x2000, scoped, tag = 'output window, operand 0']
    #allocation19 [shape = 'u8[32768]{0}', space=vmem, size = 0x8000, scoped, tag = 'output window, operand 1']
    #allocation20 [shape = 's32[2]{0}', space=sflag, size = 0x8, scoped, tag = 'scoped memory for tpu_custom_call.1']
    %18 = vsyncpa [#allocation7], 0
    %s19 = scalar_lea.sflag [#allocation7], 1
    %20 = vsyncpa %s19, 0
    %21 = vsyncpa [#allocation10], 0
    %s22 = scalar_lea.sflag [#allocation10], 1
    %23 = vsyncpa %s22, 0
    %24 = vsyncpa [#allocation13], 0
    %25 = vsyncpa [#allocation16], 0
    %26 = vsyncpa [#allocation8], 0
    %s27 = scalar_lea.sflag [#allocation8], 1
    %28 = vsyncpa %s27, 0
    %29 = vsyncpa [#allocation20], 0
    %s30 = scalar_lea.sflag [#allocation20], 1
    %31 = vsyncpa %s30, 0
    loop: start=0, step=1, limit=4
    $region2: #{tpu_custom_call.1} parent=1 // loop_pre_header
      _
    $region3: #{tpu_custom_call.1} parent=1 // loop_header
      %s33 = sphi 0, %s37
      %p34 = scmp.ge.s32.totalorder %s33, 4
      %s40 = sphi 0, %s52
      %s41 = sphi 0, %s48
      %s42 = sphi 0, %s40
      %s43 = sphi 0, %s41
      %s44 = sphi 0, %s42
      %s45 = sphi 0, %s43
      %s57 = sphi 0, %s59
      %s60 = sphi 0, %s57
      %s61 = sphi 0, %s60
      %s77 = sphi 0, %s61
      %s83 = sphi 0, %s85
      %s86 = sphi 0, %s83
      %s87 = sphi 0, %s86
      %s103 = sphi 0, %s87
      %s109 = sphi 0, %s111
      %s112 = sphi 0, %s109
      %s113 = sphi 0, %s112
      %s129 = sphi 0, %s113
      %s133 = sphi 0, %s133
      %s135 = sphi 0, %s133
      %s136 = sphi 0, %s135
      %s150 = sphi 0, %s136
      %s154 = sphi 0, %s154
      %s156 = sphi 0, %s154
      %s157 = sphi 0, %s156
      %s171 = sphi 0, %s157
      %s175 = sphi 0, %s175
      %s177 = sphi 0, %s175
      %s178 = sphi 0, %s177
      %s192 = sphi 0, %s178
      %s196 = sphi 0, %s196
      %s198 = sphi 0, %s196
      %s199 = sphi 0, %s198
      %s213 = sphi 0, %s199
      %s217 = sphi 0, %s217
      %s219 = sphi 0, %s217
      %s220 = sphi 0, %s219
      %s234 = sphi 0, %s220
      %s238 = sphi 0, %s238
      %s240 = sphi 0, %s238
      %s241 = sphi 0, %s240
      %s255 = sphi 0, %s241
      %s259 = sphi 0, %s259
      %s261 = sphi 0, %s259
      %s262 = sphi 0, %s261
      %s276 = sphi 0, %s262
      %s280 = sphi 0, %s280
      %s282 = sphi 0, %s280
      %s283 = sphi 0, %s282
      %s297 = sphi 0, %s283
      %s305 = sphi 0, %s307
      %s308 = sphi 0, %s305
      %s309 = sphi 0, %s308
      %s325 = sphi 0, %s309
      %s333 = sphi 0, %s335
      %s336 = sphi 0, %s333
      %s337 = sphi 0, %s336
      %s353 = sphi 0, %s337
    $region4: #{tpu_custom_call.1} parent=1 // loop_header_branch
      %36 = sbr.rel (%p34) target = $region8
    $region5: #{tpu_custom_call.1} parent=1 // loop_body
      %s38 = ssub.s32 %s33, 1
      %s39 = ssub.s32 %s33, 2
      %s46 = sadd.s32 1, %s41
      %p47 = scmp.ge.s32.totalorder %s46, 1
      %s48 = scalar_select %p47, 0, %s46
      %s49 = sadd.s32 1, %s40
      %s50 = scalar_select %p47, %s49, %s40
      %p51 = scmp.ge.s32.totalorder %s50, 2
      %s52 = scalar_select %p51, 0, %s50
      %s53 = ssub.s32 %s40, %s52
      %s54 = ssub.s32 %s41, %s48
      %s55 = sor.u32 %s53, %s54
      %p56 = scmp.eq.s32.totalorder %s55, 0
      %s58 = sadd.s32 %s57, 1
      %s59 = scalar_select %p56, %s57, %s58
      %p62 = pneg %p56
      %p63 = scmp.eq.s32.totalorder %s33, 1
      %p64 = por %p62, %p63
      %p65 = scmp.ne.s32.totalorder %s57, %s60
      %p66 = scmp.eq.s32.totalorder %s33, 0
      %p67 = por %p65, %p66
      %p68 = scmp.ne.s32.totalorder %s57, %s60
      %p69 = scmp.eq.s32.totalorder %s38, 1
      %p70 = por %p68, %p69
      %p71 = scmp.ne.s32.totalorder %s60, %s61
      %p72 = scmp.eq.s32.totalorder %s38, 0
      %p73 = por %p71, %p72
      %p74 = scmp.ne.s32.totalorder %s60, %s61
      %p75 = scmp.eq.s32.totalorder %s39, 1
      %p76 = por %p74, %p75
      %p78 = scmp.ne.s32.totalorder %s61, %s77
      %p79 = scmp.eq.s32.totalorder %s39, 0
      %p80 = por %p78, %p79
      %s81 = ssub.s32 %s40, %s52
      %p82 = scmp.eq.s32.totalorder %s81, 0
      %s84 = sadd.s32 %s83, 1
      %s85 = scalar_select %p82, %s83, %s84
      %p88 = pneg %p82
      %p89 = scmp.eq.s32.totalorder %s33, 1
      %p90 = por %p88, %p89
      %p91 = scmp.ne.s32.totalorder %s83, %s86
      %p92 = scmp.eq.s32.totalorder %s33, 0
      %p93 = por %p91, %p92
      %p94 = scmp.ne.s32.totalorder %s83, %s86
      %p95 = scmp.eq.s32.totalorder %s38, 1
      %p96 = por %p94, %p95
      %p97 = scmp.ne.s32.totalorder %s86, %s87
      %p98 = scmp.eq.s32.totalorder %s38, 0
      %p99 = por %p97, %p98
      %p100 = scmp.ne.s32.totalorder %s86, %s87
      %p101 = scmp.eq.s32.totalorder %s39, 1
      %p102 = por %p100, %p101
      %p104 = scmp.ne.s32.totalorder %s87, %s103
      %p105 = scmp.eq.s32.totalorder %s39, 0
      %p106 = por %p104, %p105
      %s107 = ssub.s32 %s40, %s52
      %p108 = scmp.eq.s32.totalorder %s107, 0
      %s110 = sadd.s32 %s109, 1
      %s111 = scalar_select %p108, %s109, %s110
      %p114 = pneg %p108
      %p115 = scmp.eq.s32.totalorder %s33, 1
      %p116 = por %p114, %p115
      %p117 = scmp.ne.s32.totalorder %s109, %s112
      %p118 = scmp.eq.s32.totalorder %s33, 0
      %p119 = por %p117, %p118
      %p120 = scmp.ne.s32.totalorder %s109, %s112
      %p121 = scmp.eq.s32.totalorder %s38, 1
      %p122 = por %p120, %p121
      %p123 = scmp.ne.s32.totalorder %s112, %s113
      %p124 = scmp.eq.s32.totalorder %s38, 0
      %p125 = por %p123, %p124
      %p126 = scmp.ne.s32.totalorder %s112, %s113
      %p127 = scmp.eq.s32.totalorder %s39, 1
      %p128 = por %p126, %p127
      %p130 = scmp.ne.s32.totalorder %s113, %s129
      %p131 = scmp.eq.s32.totalorder %s39, 0
      %p132 = por %p130, %p131
      %s134 = sadd.s32 %s133, 1
      %p137 = scmp.eq.s32.totalorder %s33, 1
      %p138 = scmp.ne.s32.totalorder %s133, %s135
      %p139 = scmp.eq.s32.totalorder %s33, 0
      %p140 = por %p138, %p139
      %p141 = scmp.ne.s32.totalorder %s133, %s135
      %p142 = scmp.eq.s32.totalorder %s38, 1
      %p143 = por %p141, %p142
      %p144 = scmp.ne.s32.totalorder %s135, %s136
      %p145 = scmp.eq.s32.totalorder %s38, 0
      %p146 = por %p144, %p145
      %p147 = scmp.ne.s32.totalorder %s135, %s136
      %p148 = scmp.eq.s32.totalorder %s39, 1
      %p149 = por %p147, %p148
      %p151 = scmp.ne.s32.totalorder %s136, %s150
      %p152 = scmp.eq.s32.totalorder %s39, 0
      %p153 = por %p151, %p152
      %s155 = sadd.s32 %s154, 1
      %p158 = scmp.eq.s32.totalorder %s33, 1
      %p159 = scmp.ne.s32.totalorder %s154, %s156
      %p160 = scmp.eq.s32.totalorder %s33, 0
      %p161 = por %p159, %p160
      %p162 = scmp.ne.s32.totalorder %s154, %s156
      %p163 = scmp.eq.s32.totalorder %s38, 1
      %p164 = por %p162, %p163
      %p165 = scmp.ne.s32.totalorder %s156, %s157
      %p166 = scmp.eq.s32.totalorder %s38, 0
      %p167 = por %p165, %p166
      %p168 = scmp.ne.s32.totalorder %s156, %s157
      %p169 = scmp.eq.s32.totalorder %s39, 1
      %p170 = por %p168, %p169
      %p172 = scmp.ne.s32.totalorder %s157, %s171
      %p173 = scmp.eq.s32.totalorder %s39, 0
      %p174 = por %p172, %p173
      %s176 = sadd.s32 %s175, 1
      %p179 = scmp.eq.s32.totalorder %s33, 1
      %p180 = scmp.ne.s32.totalorder %s175, %s177
      %p181 = scmp.eq.s32.totalorder %s33, 0
      %p182 = por %p180, %p181
      %p183 = scmp.ne.s32.totalorder %s175, %s177
      %p184 = scmp.eq.s32.totalorder %s38, 1
      %p185 = por %p183, %p184
      %p186 = scmp.ne.s32.totalorder %s177, %s178
      %p187 = scmp.eq.s32.totalorder %s38, 0
      %p188 = por %p186, %p187
      %p189 = scmp.ne.s32.totalorder %s177, %s178
      %p190 = scmp.eq.s32.totalorder %s39, 1
      %p191 = por %p189, %p190
      %p193 = scmp.ne.s32.totalorder %s178, %s192
      %p194 = scmp.eq.s32.totalorder %s39, 0
      %p195 = por %p193, %p194
      %s197 = sadd.s32 %s196, 1
      %p200 = scmp.eq.s32.totalorder %s33, 1
      %p201 = scmp.ne.s32.totalorder %s196, %s198
      %p202 = scmp.eq.s32.totalorder %s33, 0
      %p203 = por %p201, %p202
      %p204 = scmp.ne.s32.totalorder %s196, %s198
      %p205 = scmp.eq.s32.totalorder %s38, 1
      %p206 = por %p204, %p205
      %p207 = scmp.ne.s32.totalorder %s198, %s199
      %p208 = scmp.eq.s32.totalorder %s38, 0
      %p209 = por %p207, %p208
      %p210 = scmp.ne.s32.totalorder %s198, %s199
      %p211 = scmp.eq.s32.totalorder %s39, 1
      %p212 = por %p210, %p211
      %p214 = scmp.ne.s32.totalorder %s199, %s213
      %p215 = scmp.eq.s32.totalorder %s39, 0
      %p216 = por %p214, %p215
      %s218 = sadd.s32 %s217, 1
      %p221 = scmp.eq.s32.totalorder %s33, 1
      %p222 = scmp.ne.s32.totalorder %s217, %s219
      %p223 = scmp.eq.s32.totalorder %s33, 0
      %p224 = por %p222, %p223
      %p225 = scmp.ne.s32.totalorder %s217, %s219
      %p226 = scmp.eq.s32.totalorder %s38, 1
      %p227 = por %p225, %p226
      %p228 = scmp.ne.s32.totalorder %s219, %s220
      %p229 = scmp.eq.s32.totalorder %s38, 0
      %p230 = por %p228, %p229
      %p231 = scmp.ne.s32.totalorder %s219, %s220
      %p232 = scmp.eq.s32.totalorder %s39, 1
      %p233 = por %p231, %p232
      %p235 = scmp.ne.s32.totalorder %s220, %s234
      %p236 = scmp.eq.s32.totalorder %s39, 0
      %p237 = por %p235, %p236
      %s239 = sadd.s32 %s238, 1
      %p242 = scmp.eq.s32.totalorder %s33, 1
      %p243 = scmp.ne.s32.totalorder %s238, %s240
      %p244 = scmp.eq.s32.totalorder %s33, 0
      %p245 = por %p243, %p244
      %p246 = scmp.ne.s32.totalorder %s238, %s240
      %p247 = scmp.eq.s32.totalorder %s38, 1
      %p248 = por %p246, %p247
      %p249 = scmp.ne.s32.totalorder %s240, %s241
      %p250 = scmp.eq.s32.totalorder %s38, 0
      %p251 = por %p249, %p250
      %p252 = scmp.ne.s32.totalorder %s240, %s241
      %p253 = scmp.eq.s32.totalorder %s39, 1
      %p254 = por %p252, %p253
      %p256 = scmp.ne.s32.totalorder %s241, %s255
      %p257 = scmp.eq.s32.totalorder %s39, 0
      %p258 = por %p256, %p257
      %s260 = sadd.s32 %s259, 1
      %p263 = scmp.eq.s32.totalorder %s33, 1
      %p264 = scmp.ne.s32.totalorder %s259, %s261
      %p265 = scmp.eq.s32.totalorder %s33, 0
      %p266 = por %p264, %p265
      %p267 = scmp.ne.s32.totalorder %s259, %s261
      %p268 = scmp.eq.s32.totalorder %s38, 1
      %p269 = por %p267, %p268
      %p270 = scmp.ne.s32.totalorder %s261, %s262
      %p271 = scmp.eq.s32.totalorder %s38, 0
      %p272 = por %p270, %p271
      %p273 = scmp.ne.s32.totalorder %s261, %s262
      %p274 = scmp.eq.s32.totalorder %s39, 1
      %p275 = por %p273, %p274
      %p277 = scmp.ne.s32.totalorder %s262, %s276
      %p278 = scmp.eq.s32.totalorder %s39, 0
      %p279 = por %p277, %p278
      %s281 = sadd.s32 %s280, 1
      %p284 = scmp.eq.s32.totalorder %s33, 1
      %p285 = scmp.ne.s32.totalorder %s280, %s282
      %p286 = scmp.eq.s32.totalorder %s33, 0
      %p287 = por %p285, %p286
      %p288 = scmp.ne.s32.totalorder %s280, %s282
      %p289 = scmp.eq.s32.totalorder %s38, 1
      %p290 = por %p288, %p289
      %p291 = scmp.ne.s32.totalorder %s282, %s283
      %p292 = scmp.eq.s32.totalorder %s38, 0
      %p293 = por %p291, %p292
      %p294 = scmp.ne.s32.totalorder %s282, %s283
      %p295 = scmp.eq.s32.totalorder %s39, 1
      %p296 = por %p294, %p295
      %p298 = scmp.ne.s32.totalorder %s283, %s297
      %p299 = scmp.eq.s32.totalorder %s39, 0
      %p300 = por %p298, %p299
      %s301 = ssub.s32 %s40, %s52
      %s302 = ssub.s32 %s41, %s48
      %s303 = sor.u32 %s301, %s302
      %p304 = scmp.eq.s32.totalorder %s303, 0
      %s306 = sadd.s32 %s305, 1
      %s307 = scalar_select %p304, %s305, %s306
      %p310 = pneg %p304
      %p311 = scmp.eq.s32.totalorder %s33, 1
      %p312 = por %p310, %p311
      %p313 = scmp.ne.s32.totalorder %s305, %s308
      %p314 = scmp.eq.s32.totalorder %s33, 0
      %p315 = por %p313, %p314
      %p316 = scmp.ne.s32.totalorder %s305, %s308
      %p317 = scmp.eq.s32.totalorder %s38, 1
      %p318 = por %p316, %p317
      %p319 = scmp.ne.s32.totalorder %s308, %s309
      %p320 = scmp.eq.s32.totalorder %s38, 0
      %p321 = por %p319, %p320
      %p322 = scmp.ne.s32.totalorder %s308, %s309
      %p323 = scmp.eq.s32.totalorder %s39, 1
      %p324 = por %p322, %p323
      %p326 = scmp.ne.s32.totalorder %s309, %s325
      %p327 = scmp.eq.s32.totalorder %s39, 0
      %p328 = por %p326, %p327
      %s329 = ssub.s32 %s40, %s52
      %s330 = ssub.s32 %s41, %s48
      %s331 = sor.u32 %s329, %s330
      %p332 = scmp.eq.s32.totalorder %s331, 0
      %s334 = sadd.s32 %s333, 1
      %s335 = scalar_select %p332, %s333, %s334
      %p338 = pneg %p332
      %p339 = scmp.eq.s32.totalorder %s33, 1
      %p340 = por %p338, %p339
      %p341 = scmp.ne.s32.totalorder %s333, %s336
      %p342 = scmp.eq.s32.totalorder %s33, 0
      %p343 = por %p341, %p342
      %p344 = scmp.ne.s32.totalorder %s333, %s336
      %p345 = scmp.eq.s32.totalorder %s38, 1
      %p346 = por %p344, %p345
      %p347 = scmp.ne.s32.totalorder %s336, %s337
      %p348 = scmp.eq.s32.totalorder %s38, 0
      %p349 = por %p347, %p348
      %p350 = scmp.ne.s32.totalorder %s336, %s337
      %p351 = scmp.eq.s32.totalorder %s39, 1
      %p352 = por %p350, %p351
      %p354 = scmp.ne.s32.totalorder %s337, %s353
      %p355 = scmp.eq.s32.totalorder %s39, 0
      %p356 = por %p354, %p355
      %p357 = scmp.le.s32.totalorder 1, %s33
      %p358 = scmp.lt.s32.totalorder %s33, 3
      %p359 = pnand %p357, %p358
      %p360 = pneg %p359
      // Predicated region
      $region9: #{tpu_custom_call.1} parent=5 // pred_check
        _
      $region10: #{tpu_custom_call.1} parent=5 // pred_check_branch
        %362 = sbr.rel (%p359) target = $region12
      $region11: #{tpu_custom_call.1} parent=5 // pred_region
        %s363 = ssub.s32 %s33, 1
        // Predicated region
        $region13: #{tpu_custom_call.1} parent=11 // pred_check
          %p364 = pneg %p146
        $region14: #{tpu_custom_call.1} parent=11 // pred_check_branch
          %366 = sbr.rel (%p364) target = $region16
        $region15: #{tpu_custom_call.1} parent=11 // pred_region
          %s368 = ssub.s32 512, 512
          %369 = vsyncadd [#allocation13], %s368
          %s370 = sshll.u32 [#allocation12], 4
          %s371 = int_to_ptr.vmem [resolvable:$true] %s370
          %376 = dma.hbm_to_vmem [thread:$0]  %s3, 512, %s371, [#allocation13], 128, 128, 8
        $region16: #{tpu_custom_call.1} parent=11 // pred_fallthru
          _
        // Predicated region
        $region17: #{tpu_custom_call.1} parent=11 // pred_check
          %p377 = pneg %p167
        $region18: #{tpu_custom_call.1} parent=11 // pred_check_branch
          %379 = sbr.rel (%p377) target = $region20
        $region19: #{tpu_custom_call.1} parent=11 // pred_region
          _
        $region20: #{tpu_custom_call.1} parent=11 // pred_fallthru
          _
        // Predicated region
        $region21: #{tpu_custom_call.1} parent=11 // pred_check
          %p380 = pneg %p188
        $region22: #{tpu_custom_call.1} parent=11 // pred_check_branch
          %382 = sbr.rel (%p380) target = $region24
        $region23: #{tpu_custom_call.1} parent=11 // pred_region
          %s384 = ssub.s32 512, 512
          %385 = vsyncadd [#allocation13], %s384
          %s386 = sshll.u32 [#allocation14], 4
          %s387 = int_to_ptr.vmem [resolvable:$true] %s386
          %392 = dma.hbm_to_vmem [thread:$0]  %s5, 512, %s387, [#allocation13], 128, 128, 8
        $region24: #{tpu_custom_call.1} parent=11 // pred_fallthru
          _
        // Predicated region
        $region25: #{tpu_custom_call.1} parent=11 // pred_check
          %p393 = pneg %p209
        $region26: #{tpu_custom_call.1} parent=11 // pred_check_branch
          %395 = sbr.rel (%p393) target = $region28
        $region27: #{tpu_custom_call.1} parent=11 // pred_region
          _
        $region28: #{tpu_custom_call.1} parent=11 // pred_fallthru
          _
        // Predicated region
        $region29: #{tpu_custom_call.1} parent=11 // pred_check
          %p396 = pneg %p230
        $region30: #{tpu_custom_call.1} parent=11 // pred_check_branch
          %398 = sbr.rel (%p396) target = $region32
        $region31: #{tpu_custom_call.1} parent=11 // pred_region
          %s400 = ssub.s32 512, 512
          %401 = vsyncadd [#allocation16], %s400
          %s402 = sshll.u32 [#allocation15], 4
          %s403 = int_to_ptr.vmem [resolvable:$true] %s402
          %408 = dma.hbm_to_vmem [thread:$0]  %s7, 512, %s403, [#allocation16], 128, 128, 8
        $region32: #{tpu_custom_call.1} parent=11 // pred_fallthru
          _
        // Predicated region
        $region33: #{tpu_custom_call.1} parent=11 // pred_check
          %p409 = pneg %p251
        $region34: #{tpu_custom_call.1} parent=11 // pred_check_branch
          %411 = sbr.rel (%p409) target = $region36
        $region35: #{tpu_custom_call.1} parent=11 // pred_region
          _
        $region36: #{tpu_custom_call.1} parent=11 // pred_fallthru
          _
        // Predicated region
        $region37: #{tpu_custom_call.1} parent=11 // pred_check
          %p412 = pneg %p272
        $region38: #{tpu_custom_call.1} parent=11 // pred_check_branch
          %414 = sbr.rel (%p412) target = $region40
        $region39: #{tpu_custom_call.1} parent=11 // pred_region
          %s416 = ssub.s32 512, 512
          %417 = vsyncadd [#allocation16], %s416
          %s418 = sshll.u32 [#allocation17], 4
          %s419 = int_to_ptr.vmem [resolvable:$true] %s418
          %424 = dma.hbm_to_vmem [thread:$0]  %s9, 512, %s419, [#allocation16], 128, 128, 8
        $region40: #{tpu_custom_call.1} parent=11 // pred_fallthru
          _
        // Predicated region
        $region41: #{tpu_custom_call.1} parent=11 // pred_check
          %p425 = pneg %p293
        $region42: #{tpu_custom_call.1} parent=11 // pred_check_branch
          %427 = sbr.rel (%p425) target = $region44
        $region43: #{tpu_custom_call.1} parent=11 // pred_region
          _
        $region44: #{tpu_custom_call.1} parent=11 // pred_fallthru
          _
      $region12: #{tpu_custom_call.1} parent=5 // pred_fallthru
        _
      %p428 = scmp.lt.s32.totalorder %s33, 2
      // Predicated region
      $region45: #{tpu_custom_call.1} parent=5 // pred_check
        %p429 = pneg %p428
      $region46: #{tpu_custom_call.1} parent=5 // pred_check_branch
        %431 = sbr.rel (%p429) target = $region48
      $region47: #{tpu_custom_call.1} parent=5 // pred_region
        // Predicated region
        $region49: #{tpu_custom_call.1} parent=47 // pred_check
          %p432 = pneg %p67
        $region50: #{tpu_custom_call.1} parent=47 // pred_check_branch
          %434 = sbr.rel (%p432) target = $region52
        $region51: #{tpu_custom_call.1} parent=47 // pred_region
          %s435 = sand.u32 %s57, 1
          %s436 = scalar_lea.sflag [#allocation7], %s435
          %s437 = sand.u32 %s57, 1
          %s438 = smul.addr %s437, 8
          %s439 = scalar_lea.vmem [#allocation6], %s438
          %s441 = ssub.s32 128, 128
          %442 = vsyncadd %s436, %s441
          %s443 = sadd.s32 %s41, %s40
          %s444 = smul.addr %s443, 128
          %s445 = scalar_lea.hbm %s0, %s444
          %s447 = sshll.u32 %s439, 4
          %s448 = int_to_ptr.vmem [resolvable:$true] %s447
          %450 = dma.hbm_to_vmem [thread:$0]  %s445, 128, %s448, %s436
        $region52: #{tpu_custom_call.1} parent=47 // pred_fallthru
          _
        // Predicated region
        $region53: #{tpu_custom_call.1} parent=47 // pred_check
          %p451 = pneg %p93
        $region54: #{tpu_custom_call.1} parent=47 // pred_check_branch
          %453 = sbr.rel (%p451) target = $region56
        $region55: #{tpu_custom_call.1} parent=47 // pred_region
          %s454 = sand.u32 %s33, 1
          %s455 = scalar_lea.sflag [#allocation10], %s454
          %s456 = sand.u32 %s83, 1
          %s457 = smul.addr %s456, 8
          %s458 = scalar_lea.vmem [#allocation9], %s457
          %s460 = ssub.s32 128, 128
          %461 = vsyncadd %s455, %s460
          %s462 = smul.addr %s40, 128
          %s463 = scalar_lea.hbm %s1, %s462
          %s465 = sshll.u32 %s458, 4
          %s466 = int_to_ptr.vmem [resolvable:$true] %s465
          %468 = dma.hbm_to_vmem [thread:$0]  %s463, 128, %s466, %s455
        $region56: #{tpu_custom_call.1} parent=47 // pred_fallthru
          _
        // Predicated region
        $region57: #{tpu_custom_call.1} parent=47 // pred_check
          %p469 = pneg %p119
        $region58: #{tpu_custom_call.1} parent=47 // pred_check_branch
          %471 = sbr.rel (%p469) target = $region60
        $region59: #{tpu_custom_call.1} parent=47 // pred_region
          %s472 = sand.u32 %s33, 1
          %s473 = scalar_lea.sflag [#allocation10], %s472
          %s474 = sand.u32 %s109, 1
          %s475 = smul.addr %s474, 8
          %s476 = scalar_lea.vmem [#allocation11], %s475
          %s478 = ssub.s32 128, 128
          %479 = vsyncadd %s473, %s478
          %s480 = smul.addr %s40, 128
          %s481 = scalar_lea.hbm %s2, %s480
          %s483 = sshll.u32 %s476, 4
          %s484 = int_to_ptr.vmem [resolvable:$true] %s483
          %486 = dma.hbm_to_vmem [thread:$0]  %s481, 128, %s484, %s473
        $region60: #{tpu_custom_call.1} parent=47 // pred_fallthru
          _
      $region48: #{tpu_custom_call.1} parent=5 // pred_fallthru
        _
      %p487 = scmp.le.s32.totalorder 1, %s33
      %p488 = scmp.lt.s32.totalorder %s33, 3
      %p489 = pnand %p487, %p488
      %p490 = pneg %p489
      // Predicated region
      $region61: #{tpu_custom_call.1} parent=5 // pred_check
        _
      $region62: #{tpu_custom_call.1} parent=5 // pred_check_branch
        %492 = sbr.rel (%p489) target = $region64
      $region63: #{tpu_custom_call.1} parent=5 // pred_region
        %s493 = ssub.s32 %s33, 1
        %s494 = sand.u32 %s60, 1
        %s495 = scalar_lea.sflag [#allocation7], %s494
        %s496 = sand.u32 %s60, 1
        %s497 = smul.addr %s496, 8
        %s498 = scalar_lea.vmem [#allocation6], %s497
        // Predicated region
        $region65: #{tpu_custom_call.1} parent=63 // pred_check
          %p499 = pneg %p73
        $region66: #{tpu_custom_call.1} parent=63 // pred_check_branch
          %501 = sbr.rel (%p499) target = $region68
        $region67: #{tpu_custom_call.1} parent=63 // pred_region
          %502 = dma.done %s495, 128
        $region68: #{tpu_custom_call.1} parent=63 // pred_fallthru
          _
        %s503 = sand.u32 %s38, 1
        %s504 = scalar_lea.sflag [#allocation10], %s503
        %s505 = sand.u32 %s86, 1
        %s506 = smul.addr %s505, 8
        %s507 = scalar_lea.vmem [#allocation9], %s506
        // Predicated region
        $region69: #{tpu_custom_call.1} parent=63 // pred_check
          %p508 = pneg %p99
        $region70: #{tpu_custom_call.1} parent=63 // pred_check_branch
          %510 = sbr.rel (%p508) target = $region72
        $region71: #{tpu_custom_call.1} parent=63 // pred_region
          %511 = dma.done %s504, 128
        $region72: #{tpu_custom_call.1} parent=63 // pred_fallthru
          _
        %s512 = sand.u32 %s38, 1
        %s513 = scalar_lea.sflag [#allocation10], %s512
        %s514 = sand.u32 %s112, 1
        %s515 = smul.addr %s514, 8
        %s516 = scalar_lea.vmem [#allocation11], %s515
        // Predicated region
        $region73: #{tpu_custom_call.1} parent=63 // pred_check
          %p517 = pneg %p125
        $region74: #{tpu_custom_call.1} parent=63 // pred_check_branch
          %519 = sbr.rel (%p517) target = $region76
        $region75: #{tpu_custom_call.1} parent=63 // pred_region
          %520 = dma.done %s513, 128
        $region76: #{tpu_custom_call.1} parent=63 // pred_fallthru
          _
        // Predicated region
        $region77: #{tpu_custom_call.1} parent=63 // pred_check
          %p521 = pneg %p146
        $region78: #{tpu_custom_call.1} parent=63 // pred_check_branch
          %523 = sbr.rel (%p521) target = $region80
        $region79: #{tpu_custom_call.1} parent=63 // pred_region
          %524 = dma.done [#allocation13], 512
        $region80: #{tpu_custom_call.1} parent=63 // pred_fallthru
          _
        // Predicated region
        $region81: #{tpu_custom_call.1} parent=63 // pred_check
          %p525 = pneg %p188
        $region82: #{tpu_custom_call.1} parent=63 // pred_check_branch
          %527 = sbr.rel (%p525) target = $region84
        $region83: #{tpu_custom_call.1} parent=63 // pred_region
          %528 = dma.done [#allocation13], 512
        $region84: #{tpu_custom_call.1} parent=63 // pred_fallthru
          _
        // Predicated region
        $region85: #{tpu_custom_call.1} parent=63 // pred_check
          %p529 = pneg %p230
        $region86: #{tpu_custom_call.1} parent=63 // pred_check_branch
          %531 = sbr.rel (%p529) target = $region88
        $region87: #{tpu_custom_call.1} parent=63 // pred_region
          %532 = dma.done [#allocation16], 512
        $region88: #{tpu_custom_call.1} parent=63 // pred_fallthru
          _
        // Predicated region
        $region89: #{tpu_custom_call.1} parent=63 // pred_check
          %p533 = pneg %p272
        $region90: #{tpu_custom_call.1} parent=63 // pred_check_branch
          %535 = sbr.rel (%p533) target = $region92
        $region91: #{tpu_custom_call.1} parent=63 // pred_region
          %536 = dma.done [#allocation16], 512
        $region92: #{tpu_custom_call.1} parent=63 // pred_fallthru
          _
        %s537 = sand.u32 %s60, 1
        %s538 = scalar_lea.sflag [#allocation7], %s537
        %s539 = sand.u32 %s60, 1
        %s540 = smul.addr %s539, 8
        %s541 = scalar_lea.vmem [#allocation6], %s540
        %p542 = pneg %p73
        %p543 = pneg %p70
        %s544 = sand.u32 %s38, 1
        %s545 = scalar_lea.sflag [#allocation10], %s544
        %s546 = sand.u32 %s86, 1
        %s547 = smul.addr %s546, 8
        %s548 = scalar_lea.vmem [#allocation9], %s547
        %p549 = pneg %p99
        %p550 = pneg %p96
        %s551 = sand.u32 %s38, 1
        %s552 = scalar_lea.sflag [#allocation10], %s551
        %s553 = sand.u32 %s112, 1
        %s554 = smul.addr %s553, 8
        %s555 = scalar_lea.vmem [#allocation11], %s554
        %p556 = pneg %p125
        %p557 = pneg %p122
        %p558 = pneg %p146
        %p559 = pneg %p143
        %p560 = pneg %p167
        %p561 = pneg %p164
        %p562 = pneg %p188
        %p563 = pneg %p185
        %p564 = pneg %p209
        %p565 = pneg %p206
        %p566 = pneg %p230
        %p567 = pneg %p227
        %p568 = pneg %p251
        %p569 = pneg %p248
        %p570 = pneg %p272
        %p571 = pneg %p269
        %p572 = pneg %p293
        %p573 = pneg %p290
        %p574 = pneg %p321
        %p575 = pneg %p318
        %s576 = sand.u32 %s308, 1
        %s577 = scalar_lea.sflag [#allocation8], %s576
        %s578 = sand.u32 %s308, 1
        %s579 = smul.addr %s578, 8
        %s580 = scalar_lea.vmem [#allocation18], %s579
        %p581 = pneg %p349
        %p582 = pneg %p346
        %s583 = sand.u32 %s336, 1
        %s584 = scalar_lea.sflag [#allocation20], %s583
        %s585 = sand.u32 %s336, 1
        %s586 = smul.addr %s585, 32
        %s587 = scalar_lea.vmem [#allocation19], %s586
        %v588 = vld [vmem:[%s498] sm:$0xff]
        %v589 = vld [vmem:[#allocation12] sm:$0xff]
        %v590 = vld [vmem:[#allocation12 + $0x8] sm:$0xff]
        %v591 = vld [vmem:[#allocation12 + $0x10] sm:$0xff]
        %v592 = vld [vmem:[#allocation12 + $0x18] sm:$0xff]
        %v593 = vld [vmem:[%s4] sm:$0x1]
        %v595 = vlaneseq
        %v596 = vshrl.u32 %v595, 7
        %v597 = vsub.s32 0, %v596
        %v598 = vrot.slane %v593, %v597
        %vm600 = vcmask 261120
        %v602 = vsel %vm600, %v588, 0
        %604 = vmatprep.subr.mxu0 0.0
        %605 = vmatpush1.msra.mxu0 0.0
        %606 = vmatprep.subr.mxu0 0.0
        %607 = vmatpush1.msra.mxu0 0.0
        %608 = vmatprep.subr.mxu0 0.0
        %609 = vmatpush1.msra.mxu0 0.0
        %610 = vmatprep.subr.mxu0 0.0
        %611 = vmatpush1.msra.mxu0 0.0
        %612 = vmatprep.subr.mxu0 0.0
        %613 = vmatpush1.msra.mxu0 0.0
        %614 = vmatprep.subr.mxu0 0.0
        %615 = vmatpush1.msra.mxu0 0.0
        %616 = vmatprep.subr.mxu0 0.0
        %617 = vmatpush1.msra.mxu0 0.0
        %618 = vmatprep.subr.mxu0 0.0
        %619 = vmatpush1.msra.mxu0 0.0
        %620 = vmatprep.subr.mxu0 0.0
        %621 = vmatpush1.msra.mxu0 0.0
        %622 = vmatprep.subr.mxu0 0.0
        %623 = vmatpush1.msra.mxu0 0.0
        %624 = vmatprep.subr.mxu0 0.0
        %625 = vmatpush1.msra.mxu0 0.0
        %626 = vmatprep.subr.mxu0 0.0
        %627 = vmatpush1.msra.mxu0 0.0
        %628 = vmatprep.subr.mxu0 0.0
        %629 = vmatpush1.msra.mxu0 %v592
        %630 = vmatprep.subr.mxu0 0.0
        %631 = vmatpush1.msra.mxu0 %v591
        %632 = vmatprep.subr.mxu0 0.0
        %633 = vmatpush1.msra.mxu0 %v590
        %634 = vmatprep.subr.mxu0 0.0
        %635 = vmatpush1.msra.mxu0 %v589
        %636 = vmatprep.subr.mxu0 0.0
        %637 = vmatpush2.msra.mxu0 0.0
        %638 = vmatprep.subr.mxu0 0.0
        %639 = vmatpush2.msra.mxu0 0.0
        %640 = vmatprep.subr.mxu0 0.0
        %641 = vmatpush2.msra.mxu0 0.0
        %642 = vmatprep.subr.mxu0 0.0
        %643 = vmatpush2.msra.mxu0 0.0
        %644 = vmatprep.subr.mxu0 0.0
        %645 = vmatpush2.msra.mxu0 0.0
        %646 = vmatprep.subr.mxu0 0.0
        %647 = vmatpush2.msra.mxu0 0.0
        %648 = vmatprep.subr.mxu0 0.0
        %649 = vmatpush2.msra.mxu0 0.0
        %650 = vmatprep.subr.mxu0 0.0
        %651 = vmatpush2.msra.mxu0 0.0
        %652 = vmatprep.subr.mxu0 0.0
        %653 = vmatpush2.msra.mxu0 0.0
        %654 = vmatprep.subr.mxu0 0.0
        %655 = vmatpush2.msra.mxu0 0.0
        %656 = vmatprep.subr.mxu0 0.0
        %657 = vmatpush2.msra.mxu0 0.0
        %658 = vmatprep.subr.mxu0 0.0
        %659 = vmatpush2.msra.mxu0 0.0
        %660 = vmatprep.subr.mxu0 0.0
        %661 = vmatpush2.msra.mxu0 0.0
        %662 = vmatprep.subr.mxu0 0.0
        %663 = vmatpush2.msra.mxu0 0.0
        %664 = vmatprep.subr.mxu0 0.0
        %665 = vmatpush2.msra.mxu0 0.0
        %666 = vmatprep.subr.mxu0 0.0
        %667 = vmatpush2.msra.mxu0 0.0
        %668 = vmatprep.mubr.f32.mxu0 0.0
        %669 = vmatmul.mubr.f32.gmra.mxu0 %v602
        %v670 = vpop.f32.mrf.mxu0
        %v671 = vadd.f32 %v598, %v670
        %v672 = vpop.f32.mrf.mxu0
        %673 = vdwg.mxu0
        %v674 = vmul.f32 %v671, 0.35355338
        %675 = vst.msk [vmem:[#allocation2] sm:$0xff] %vm600, %v674
        %p676 = scmp.eq.s32.totalorder %s43, 0
        // Predicated region
        $region93: #{tpu_custom_call.1} parent=63 // pred_check
          %p677 = pneg %p676
        $region94: #{tpu_custom_call.1} parent=63 // pred_check_branch
          %679 = sbr.rel (%p677) target = $region96
        $region95: #{tpu_custom_call.1} parent=63 // pred_region
          %v680 = vld [vmem:[%s507] sm:$0xff]
          %v681 = vld [vmem:[%s516] sm:$0xff]
          %v682 = vld [vmem:[#allocation14] sm:$0xff]
          %v683 = vld [vmem:[#allocation14 + $0x8] sm:$0xff]
          %v684 = vld [vmem:[#allocation14 + $0x10] sm:$0xff]
          %v685 = vld [vmem:[#allocation14 + $0x18] sm:$0xff]
          %v686 = vld [vmem:[%s6] sm:$0x1]
          %v688 = vlaneseq
          %v689 = vshrl.u32 %v688, 7
          %v690 = vsub.s32 0, %v689
          %v691 = vrot.slane %v686, %v690
          %v694 = vsel %vm600, %v680, 0
          %696 = vmatprep.subr.mxu0 0.0
          %697 = vmatpush1.msra.mxu0 0.0
          %698 = vmatprep.subr.mxu0 0.0
          %699 = vmatpush1.msra.mxu0 0.0
          %700 = vmatprep.subr.mxu0 0.0
          %701 = vmatpush1.msra.mxu0 0.0
          %702 = vmatprep.subr.mxu0 0.0
          %703 = vmatpush1.msra.mxu0 0.0
          %704 = vmatprep.subr.mxu0 0.0
          %705 = vmatpush1.msra.mxu0 0.0
          %706 = vmatprep.subr.mxu0 0.0
          %707 = vmatpush1.msra.mxu0 0.0
          %708 = vmatprep.subr.mxu0 0.0
          %709 = vmatpush1.msra.mxu0 0.0
          %710 = vmatprep.subr.mxu0 0.0
          %711 = vmatpush1.msra.mxu0 0.0
          %712 = vmatprep.subr.mxu0 0.0
          %713 = vmatpush1.msra.mxu0 0.0
          %714 = vmatprep.subr.mxu0 0.0
          %715 = vmatpush1.msra.mxu0 0.0
          %716 = vmatprep.subr.mxu0 0.0
          %717 = vmatpush1.msra.mxu0 0.0
          %718 = vmatprep.subr.mxu0 0.0
          %719 = vmatpush1.msra.mxu0 0.0
          %720 = vmatprep.subr.mxu0 0.0
          %721 = vmatpush1.msra.mxu0 %v685
          %722 = vmatprep.subr.mxu0 0.0
          %723 = vmatpush1.msra.mxu0 %v684
          %724 = vmatprep.subr.mxu0 0.0
          %725 = vmatpush1.msra.mxu0 %v683
          %726 = vmatprep.subr.mxu0 0.0
          %727 = vmatpush1.msra.mxu0 %v682
          %728 = vmatprep.subr.mxu0 0.0
          %729 = vmatpush2.msra.mxu0 0.0
          %730 = vmatprep.subr.mxu0 0.0
          %731 = vmatpush2.msra.mxu0 0.0
          %732 = vmatprep.subr.mxu0 0.0
          %733 = vmatpush2.msra.mxu0 0.0
          %734 = vmatprep.subr.mxu0 0.0
          %735 = vmatpush2.msra.mxu0 0.0
          %736 = vmatprep.subr.mxu0 0.0
          %737 = vmatpush2.msra.mxu0 0.0
          %738 = vmatprep.subr.mxu0 0.0
          %739 = vmatpush2.msra.mxu0 0.0
          %740 = vmatprep.subr.mxu0 0.0
          %741 = vmatpush2.msra.mxu0 0.0
          %742 = vmatprep.subr.mxu0 0.0
          %743 = vmatpush2.msra.mxu0 0.0
          %744 = vmatprep.subr.mxu0 0.0
          %745 = vmatpush2.msra.mxu0 0.0
          %746 = vmatprep.subr.mxu0 0.0
          %747 = vmatpush2.msra.mxu0 0.0
          %748 = vmatprep.subr.mxu0 0.0
          %749 = vmatpush2.msra.mxu0 0.0
          %750 = vmatprep.subr.mxu0 0.0
          %751 = vmatpush2.msra.mxu0 0.0
          %752 = vmatprep.subr.mxu0 0.0
          %753 = vmatpush2.msra.mxu0 0.0
          %754 = vmatprep.subr.mxu0 0.0
          %755 = vmatpush2.msra.mxu0 0.0
          %756 = vmatprep.subr.mxu0 0.0
          %757 = vmatpush2.msra.mxu0 0.0
          %758 = vmatprep.subr.mxu0 0.0
          %759 = vmatpush2.msra.mxu0 0.0
          %760 = vmatprep.mubr.f32.mxu0 0.0
          %761 = vmatmul.mubr.f32.gmra.mxu0 %v694
          %v762 = vpop.f32.mrf.mxu0
          %v763 = vadd.f32 %v691, %v762
          %v764 = vpop.f32.mrf.mxu0
          %765 = vdwg.mxu0
          %v766 = vld [vmem:[#allocation15] sm:$0xff]
          %v767 = vld [vmem:[#allocation15 + $0x8] sm:$0xff]
          %v768 = vld [vmem:[#allocation15 + $0x10] sm:$0xff]
          %v769 = vld [vmem:[#allocation15 + $0x18] sm:$0xff]
          %v770 = vld [vmem:[%s8] sm:$0x1]
          %v772 = vlaneseq
          %v773 = vshrl.u32 %v772, 7
          %v774 = vsub.s32 0, %v773
          %v775 = vrot.slane %v770, %v774
          %v778 = vsel %vm600, %v681, 0
          %780 = vmatprep.subr.mxu0 0.0
          %781 = vmatpush1.msra.mxu0 0.0
          %782 = vmatprep.subr.mxu0 0.0
          %783 = vmatpush1.msra.mxu0 0.0
          %784 = vmatprep.subr.mxu0 0.0
          %785 = vmatpush1.msra.mxu0 0.0
          %786 = vmatprep.subr.mxu0 0.0
          %787 = vmatpush1.msra.mxu0 0.0
          %788 = vmatprep.subr.mxu0 0.0
          %789 = vmatpush1.msra.mxu0 0.0
          %790 = vmatprep.subr.mxu0 0.0
          %791 = vmatpush1.msra.mxu0 0.0
          %792 = vmatprep.subr.mxu0 0.0
          %793 = vmatpush1.msra.mxu0 0.0
          %794 = vmatprep.subr.mxu0 0.0
          %795 = vmatpush1.msra.mxu0 0.0
          %796 = vmatprep.subr.mxu0 0.0
          %797 = vmatpush1.msra.mxu0 0.0
          %798 = vmatprep.subr.mxu0 0.0
          %799 = vmatpush1.msra.mxu0 0.0
          %800 = vmatprep.subr.mxu0 0.0
          %801 = vmatpush1.msra.mxu0 0.0
          %802 = vmatprep.subr.mxu0 0.0
          %803 = vmatpush1.msra.mxu0 0.0
          %804 = vmatprep.subr.mxu0 0.0
          %805 = vmatpush1.msra.mxu0 %v769
          %806 = vmatprep.subr.mxu0 0.0
          %807 = vmatpush1.msra.mxu0 %v768
          %808 = vmatprep.subr.mxu0 0.0
          %809 = vmatpush1.msra.mxu0 %v767
          %810 = vmatprep.subr.mxu0 0.0
          %811 = vmatpush1.msra.mxu0 %v766
          %812 = vmatprep.subr.mxu0 0.0
          %813 = vmatpush2.msra.mxu0 0.0
          %814 = vmatprep.subr.mxu0 0.0
          %815 = vmatpush2.msra.mxu0 0.0
          %816 = vmatprep.subr.mxu0 0.0
          %817 = vmatpush2.msra.mxu0 0.0
          %818 = vmatprep.subr.mxu0 0.0
          %819 = vmatpush2.msra.mxu0 0.0
          %820 = vmatprep.subr.mxu0 0.0
          %821 = vmatpush2.msra.mxu0 0.0
          %822 = vmatprep.subr.mxu0 0.0
          %823 = vmatpush2.msra.mxu0 0.0
          %824 = vmatprep.subr.mxu0 0.0
          %825 = vmatpush2.msra.mxu0 0.0
          %826 = vmatprep.subr.mxu0 0.0
          %827 = vmatpush2.msra.mxu0 0.0
          %828 = vmatprep.subr.mxu0 0.0
          %829 = vmatpush2.msra.mxu0 0.0
          %830 = vmatprep.subr.mxu0 0.0
          %831 = vmatpush2.msra.mxu0 0.0
          %832 = vmatprep.subr.mxu0 0.0
          %833 = vmatpush2.msra.mxu0 0.0
          %834 = vmatprep.subr.mxu0 0.0
          %835 = vmatpush2.msra.mxu0 0.0
          %836 = vmatprep.subr.mxu0 0.0
          %837 = vmatpush2.msra.mxu0 0.0
          %838 = vmatprep.subr.mxu0 0.0
          %839 = vmatpush2.msra.mxu0 0.0
          %840 = vmatprep.subr.mxu0 0.0
          %841 = vmatpush2.msra.mxu0 0.0
          %842 = vmatprep.subr.mxu0 0.0
          %843 = vmatpush2.msra.mxu0 0.0
          %844 = vmatprep.mubr.f32.mxu0 0.0
          %845 = vmatmul.mubr.f32.gmra.mxu0 %v778
          %v846 = vpop.f32.mrf.mxu0
          %v847 = vadd.f32 %v775, %v846
          %v848 = vpop.f32.mrf.mxu0
          %849 = vdwg.mxu0
          %850 = vst.msk [vmem:[#allocation3] sm:$0xff] %vm600, %v763
          %851 = vst.msk [vmem:[#allocation4] sm:$0xff] %vm600, %v847
        $region96: #{tpu_custom_call.1} parent=63 // pred_fallthru
          _
        %v852 = vld [vmem:[#allocation2] sm:$0xff]
        %v853 = vld [vmem:[#allocation3] sm:$0xff]
        %v854 = vld [vmem:[#allocation4] sm:$0xff]
        %vm855 = vcmask 64512
        %v857 = vsel %vm855, %v852, 0
        %v860 = vsel %vm855, %v853, 0
        %862 = vmatprep.subr.mxu0 0.0
        %863 = vmatpush1.xpose.msra.mxu0 0.0
        %864 = vmatprep.subr.mxu0 0.0
        %865 = vmatpush1.xpose.msra.mxu0 0.0
        %866 = vmatprep.subr.mxu0 0.0
        %867 = vmatpush1.xpose.msra.mxu0 0.0
        %868 = vmatprep.subr.mxu0 0.0
        %869 = vmatpush1.xpose.msra.mxu0 0.0
        %870 = vmatprep.subr.mxu0 0.0
        %871 = vmatpush1.xpose.msra.mxu0 0.0
        %872 = vmatprep.subr.mxu0 0.0
        %873 = vmatpush1.xpose.msra.mxu0 0.0
        %874 = vmatprep.subr.mxu0 0.0
        %875 = vmatpush1.xpose.msra.mxu0 0.0
        %876 = vmatprep.subr.mxu0 0.0
        %877 = vmatpush1.xpose.msra.mxu0 0.0
        %878 = vmatprep.subr.mxu0 0.0
        %879 = vmatpush1.xpose.msra.mxu0 0.0
        %880 = vmatprep.subr.mxu0 0.0
        %881 = vmatpush1.xpose.msra.mxu0 0.0
        %882 = vmatprep.subr.mxu0 0.0
        %883 = vmatpush1.xpose.msra.mxu0 0.0
        %884 = vmatprep.subr.mxu0 0.0
        %885 = vmatpush1.xpose.msra.mxu0 0.0
        %886 = vmatprep.subr.mxu0 0.0
        %887 = vmatpush1.xpose.msra.mxu0 0.0
        %888 = vmatprep.subr.mxu0 0.0
        %889 = vmatpush1.xpose.msra.mxu0 0.0
        %890 = vmatprep.subr.mxu0 0.0
        %891 = vmatpush1.xpose.msra.mxu0 0.0
        %892 = vmatprep.subr.mxu0 0.0
        %893 = vmatpush1.xpose.msra.mxu0 %v860
        %894 = vmatprep.subr.mxu0 0.0
        %895 = vmatpush2.xpose.msra.mxu0 0.0
        %896 = vmatprep.subr.mxu0 0.0
        %897 = vmatpush2.xpose.msra.mxu0 0.0
        %898 = vmatprep.subr.mxu0 0.0
        %899 = vmatpush2.xpose.msra.mxu0 0.0
        %900 = vmatprep.subr.mxu0 0.0
        %901 = vmatpush2.xpose.msra.mxu0 0.0
        %902 = vmatprep.subr.mxu0 0.0
        %903 = vmatpush2.xpose.msra.mxu0 0.0
        %904 = vmatprep.subr.mxu0 0.0
        %905 = vmatpush2.xpose.msra.mxu0 0.0
        %906 = vmatprep.subr.mxu0 0.0
        %907 = vmatpush2.xpose.msra.mxu0 0.0
        %908 = vmatprep.subr.mxu0 0.0
        %909 = vmatpush2.xpose.msra.mxu0 0.0
        %910 = vmatprep.subr.mxu0 0.0
        %911 = vmatpush2.xpose.msra.mxu0 0.0
        %912 = vmatprep.subr.mxu0 0.0
        %913 = vmatpush2.xpose.msra.mxu0 0.0
        %914 = vmatprep.subr.mxu0 0.0
        %915 = vmatpush2.xpose.msra.mxu0 0.0
        %916 = vmatprep.subr.mxu0 0.0
        %917 = vmatpush2.xpose.msra.mxu0 0.0
        %918 = vmatprep.subr.mxu0 0.0
        %919 = vmatpush2.xpose.msra.mxu0 0.0
        %920 = vmatprep.subr.mxu0 0.0
        %921 = vmatpush2.xpose.msra.mxu0 0.0
        %922 = vmatprep.subr.mxu0 0.0
        %923 = vmatpush2.xpose.msra.mxu0 0.0
        %924 = vmatprep.subr.mxu0 0.0
        %925 = vmatpush2.xpose.msra.mxu0 0.0
        %926 = vmatprep.mubr.f32.mxu0 0.0
        %927 = vmatmul.mubr.f32.gmra.mxu0 %v857
        %v928 = vpop.f32.mrf.mxu0
        %v929 = vadd.f32 0.0, %v928
        %v930 = vpop.f32.mrf.mxu0
        %931 = vdwg.mxu0
        %v932 = vsel %vm855, %v929, -inf
        %933 = vmax.xlane.f32.xlu0 %v932
        %v934 = vpop.xlane.xlu0 %933
        %v935 = vsub.f32 %v929, %v934
        %v936 = vmul.f32 %v935, 1.442695
        %v937 = vpow.pop %v936
        %v938 = vsel %vm855, %v937, 0.0
        %939 = vadd.xlane.f32.xlu0 %v938
        %v940 = vpop.xlane.xlu0 %939
        %v941 = vrcp.pop %v940
        %v942 = vmul.f32 %v937, %v941
        %943 = vst.msk [vmem:[%s587] sm:$0xff] %vm855, %v942
        %v945 = vsel %vm855, %v942, 0
        %947 = vmatprep.subr.mxu0 0.0
        %948 = vmatpush1.msra.mxu0 0.0
        %949 = vmatprep.subr.mxu0 0.0
        %950 = vmatpush1.msra.mxu0 0.0
        %951 = vmatprep.subr.mxu0 0.0
        %952 = vmatpush1.msra.mxu0 0.0
        %953 = vmatprep.subr.mxu0 0.0
        %954 = vmatpush1.msra.mxu0 0.0
        %955 = vmatprep.subr.mxu0 0.0
        %956 = vmatpush1.msra.mxu0 0.0
        %957 = vmatprep.subr.mxu0 0.0
        %958 = vmatpush1.msra.mxu0 0.0
        %959 = vmatprep.subr.mxu0 0.0
        %960 = vmatpush1.msra.mxu0 0.0
        %961 = vmatprep.subr.mxu0 0.0
        %962 = vmatpush1.msra.mxu0 0.0
        %963 = vmatprep.subr.mxu0 0.0
        %964 = vmatpush1.msra.mxu0 0.0
        %965 = vmatprep.subr.mxu0 0.0
        %966 = vmatpush1.msra.mxu0 0.0
        %967 = vmatprep.subr.mxu0 0.0
        %968 = vmatpush1.msra.mxu0 0.0
        %969 = vmatprep.subr.mxu0 0.0
        %970 = vmatpush1.msra.mxu0 0.0
        %971 = vmatprep.subr.mxu0 0.0
        %972 = vmatpush1.msra.mxu0 0.0
        %973 = vmatprep.subr.mxu0 0.0
        %974 = vmatpush1.msra.mxu0 0.0
        %975 = vmatprep.subr.mxu0 0.0
        %976 = vmatpush1.msra.mxu0 0.0
        %977 = vmatprep.subr.mxu0 0.0
        %978 = vmatpush1.msra.mxu0 %v854
        %979 = vmatprep.subr.mxu0 0.0
        %980 = vmatpush2.msra.mxu0 0.0
        %981 = vmatprep.subr.mxu0 0.0
        %982 = vmatpush2.msra.mxu0 0.0
        %983 = vmatprep.subr.mxu0 0.0
        %984 = vmatpush2.msra.mxu0 0.0
        %985 = vmatprep.subr.mxu0 0.0
        %986 = vmatpush2.msra.mxu0 0.0
        %987 = vmatprep.subr.mxu0 0.0
        %988 = vmatpush2.msra.mxu0 0.0
        %989 = vmatprep.subr.mxu0 0.0
        %990 = vmatpush2.msra.mxu0 0.0
        %991 = vmatprep.subr.mxu0 0.0
        %992 = vmatpush2.msra.mxu0 0.0
        %993 = vmatprep.subr.mxu0 0.0
        %994 = vmatpush2.msra.mxu0 0.0
        %995 = vmatprep.subr.mxu0 0.0
        %996 = vmatpush2.msra.mxu0 0.0
        %997 = vmatprep.subr.mxu0 0.0
        %998 = vmatpush2.msra.mxu0 0.0
        %999 = vmatprep.subr.mxu0 0.0
        %1000 = vmatpush2.msra.mxu0 0.0
        %1001 = vmatprep.subr.mxu0 0.0
        %1002 = vmatpush2.msra.mxu0 0.0
        %1003 = vmatprep.subr.mxu0 0.0
        %1004 = vmatpush2.msra.mxu0 0.0
        %1005 = vmatprep.subr.mxu0 0.0
        %1006 = vmatpush2.msra.mxu0 0.0
        %1007 = vmatprep.subr.mxu0 0.0
        %1008 = vmatpush2.msra.mxu0 0.0
        %1009 = vmatprep.subr.mxu0 0.0
        %1010 = vmatpush2.msra.mxu0 0.0
        %1011 = vmatprep.mubr.f32.mxu0 0.0
        %1012 = vmatmul.mubr.f32.gmra.mxu0 %v945
        %v1013 = vpop.f32.mrf.mxu0
        %v1014 = vadd.f32 0.0, %v1013
        %v1015 = vpop.f32.mrf.mxu0
        %1016 = vdwg.mxu0
        %1017 = vst.msk [vmem:[#allocation5] sm:$0xff] %vm855, %v1014
        %v1018 = vld [vmem:[#allocation2] sm:$0xff]
        %v1019 = vld [vmem:[#allocation3] sm:$0xff]
        %v1020 = vld [vmem:[#allocation4] sm:$0xff]
        %1022 = vrot.lane.b32.xlu0 %v1018, 120
        %v1023 = vpop.permute.xlu0 %1022
        %1025 = vrot.lane.b32.xlu0 %v1019, 120
        %v1026 = vpop.permute.xlu0 %1025
        %v1027 = vsel %vm855, %v1023, 0
        %v1029 = vsel %vm855, %v1026, 0
        %1031 = vmatprep.subr.mxu0 0.0
        %1032 = vmatpush1.xpose.msra.mxu0 0.0
        %1033 = vmatprep.subr.mxu0 0.0
        %1034 = vmatpush1.xpose.msra.mxu0 0.0
        %1035 = vmatprep.subr.mxu0 0.0
        %1036 = vmatpush1.xpose.msra.mxu0 0.0
        %1037 = vmatprep.subr.mxu0 0.0
        %1038 = vmatpush1.xpose.msra.mxu0 0.0
        %1039 = vmatprep.subr.mxu0 0.0
        %1040 = vmatpush1.xpose.msra.mxu0 0.0
        %1041 = vmatprep.subr.mxu0 0.0
        %1042 = vmatpush1.xpose.msra.mxu0 0.0
        %1043 = vmatprep.subr.mxu0 0.0
        %1044 = vmatpush1.xpose.msra.mxu0 0.0
        %1045 = vmatprep.subr.mxu0 0.0
        %1046 = vmatpush1.xpose.msra.mxu0 0.0
        %1047 = vmatprep.subr.mxu0 0.0
        %1048 = vmatpush1.xpose.msra.mxu0 0.0
        %1049 = vmatprep.subr.mxu0 0.0
        %1050 = vmatpush1.xpose.msra.mxu0 0.0
        %1051 = vmatprep.subr.mxu0 0.0
        %1052 = vmatpush1.xpose.msra.mxu0 0.0
        %1053 = vmatprep.subr.mxu0 0.0
        %1054 = vmatpush1.xpose.msra.mxu0 0.0
        %1055 = vmatprep.subr.mxu0 0.0
        %1056 = vmatpush1.xpose.msra.mxu0 0.0
        %1057 = vmatprep.subr.mxu0 0.0
        %1058 = vmatpush1.xpose.msra.mxu0 0.0
        %1059 = vmatprep.subr.mxu0 0.0
        %1060 = vmatpush1.xpose.msra.mxu0 0.0
        %1061 = vmatprep.subr.mxu0 0.0
        %1062 = vmatpush1.xpose.msra.mxu0 %v1029
        %1063 = vmatprep.subr.mxu0 0.0
        %1064 = vmatpush2.xpose.msra.mxu0 0.0
        %1065 = vmatprep.subr.mxu0 0.0
        %1066 = vmatpush2.xpose.msra.mxu0 0.0
        %1067 = vmatprep.subr.mxu0 0.0
        %1068 = vmatpush2.xpose.msra.mxu0 0.0
        %1069 = vmatprep.subr.mxu0 0.0
        %1070 = vmatpush2.xpose.msra.mxu0 0.0
        %1071 = vmatprep.subr.mxu0 0.0
        %1072 = vmatpush2.xpose.msra.mxu0 0.0
        %1073 = vmatprep.subr.mxu0 0.0
        %1074 = vmatpush2.xpose.msra.mxu0 0.0
        %1075 = vmatprep.subr.mxu0 0.0
        %1076 = vmatpush2.xpose.msra.mxu0 0.0
        %1077 = vmatprep.subr.mxu0 0.0
        %1078 = vmatpush2.xpose.msra.mxu0 0.0
        %1079 = vmatprep.subr.mxu0 0.0
        %1080 = vmatpush2.xpose.msra.mxu0 0.0
        %1081 = vmatprep.subr.mxu0 0.0
        %1082 = vmatpush2.xpose.msra.mxu0 0.0
        %1083 = vmatprep.subr.mxu0 0.0
        %1084 = vmatpush2.xpose.msra.mxu0 0.0
        %1085 = vmatprep.subr.mxu0 0.0
        %1086 = vmatpush2.xpose.msra.mxu0 0.0
        %1087 = vmatprep.subr.mxu0 0.0
        %1088 = vmatpush2.xpose.msra.mxu0 0.0
        %1089 = vmatprep.subr.mxu0 0.0
        %1090 = vmatpush2.xpose.msra.mxu0 0.0
        %1091 = vmatprep.subr.mxu0 0.0
        %1092 = vmatpush2.xpose.msra.mxu0 0.0
        %1093 = vmatprep.subr.mxu0 0.0
        %1094 = vmatpush2.xpose.msra.mxu0 0.0
        %1095 = vmatprep.mubr.f32.mxu0 0.0
        %1096 = vmatmul.mubr.f32.gmra.mxu0 %v1027
        %v1097 = vpop.f32.mrf.mxu0
        %v1098 = vadd.f32 0.0, %v1097
        %v1099 = vpop.f32.mrf.mxu0
        %1100 = vdwg.mxu0
        %v1101 = vsel %vm855, %v1098, -inf
        %1102 = vmax.xlane.f32.xlu0 %v1101
        %v1103 = vpop.xlane.xlu0 %1102
        %v1104 = vsub.f32 %v1098, %v1103
        %v1105 = vmul.f32 %v1104, 1.442695
        %v1106 = vpow.pop %v1105
        %v1107 = vsel %vm855, %v1106, 0.0
        %1108 = vadd.xlane.f32.xlu0 %v1107
        %v1109 = vpop.xlane.xlu0 %1108
        %v1110 = vrcp.pop %v1109
        %v1111 = vmul.f32 %v1106, %v1110
        %s1112 = scalar_lea.vmem %s587, 8 [#allocation19]
        %1113 = vst.msk [vmem:[%s1112] sm:$0xff] %vm855, %v1111
        %1115 = vrot.lane.b32.xlu0 %v1020, 120
        %v1116 = vpop.permute.xlu0 %1115
        %v1119 = vsel %vm855, %v1111, 0
        %1121 = vmatprep.subr.mxu0 0.0
        %1122 = vmatpush1.msra.mxu0 0.0
        %1123 = vmatprep.subr.mxu0 0.0
        %1124 = vmatpush1.msra.mxu0 0.0
        %1125 = vmatprep.subr.mxu0 0.0
        %1126 = vmatpush1.msra.mxu0 0.0
        %1127 = vmatprep.subr.mxu0 0.0
        %1128 = vmatpush1.msra.mxu0 0.0
        %1129 = vmatprep.subr.mxu0 0.0
        %1130 = vmatpush1.msra.mxu0 0.0
        %1131 = vmatprep.subr.mxu0 0.0
        %1132 = vmatpush1.msra.mxu0 0.0
        %1133 = vmatprep.subr.mxu0 0.0
        %1134 = vmatpush1.msra.mxu0 0.0
        %1135 = vmatprep.subr.mxu0 0.0
        %1136 = vmatpush1.msra.mxu0 0.0
        %1137 = vmatprep.subr.mxu0 0.0
        %1138 = vmatpush1.msra.mxu0 0.0
        %1139 = vmatprep.subr.mxu0 0.0
        %1140 = vmatpush1.msra.mxu0 0.0
        %1141 = vmatprep.subr.mxu0 0.0
        %1142 = vmatpush1.msra.mxu0 0.0
        %1143 = vmatprep.subr.mxu0 0.0
        %1144 = vmatpush1.msra.mxu0 0.0
        %1145 = vmatprep.subr.mxu0 0.0
        %1146 = vmatpush1.msra.mxu0 0.0
        %1147 = vmatprep.subr.mxu0 0.0
        %1148 = vmatpush1.msra.mxu0 0.0
        %1149 = vmatprep.subr.mxu0 0.0
        %1150 = vmatpush1.msra.mxu0 0.0
        %1151 = vmatprep.subr.mxu0 0.0
        %1152 = vmatpush1.msra.mxu0 %v1116
        %1153 = vmatprep.subr.mxu0 0.0
        %1154 = vmatpush2.msra.mxu0 0.0
        %1155 = vmatprep.subr.mxu0 0.0
        %1156 = vmatpush2.msra.mxu0 0.0
        %1157 = vmatprep.subr.mxu0 0.0
        %1158 = vmatpush2.msra.mxu0 0.0
        %1159 = vmatprep.subr.mxu0 0.0
        %1160 = vmatpush2.msra.mxu0 0.0
        %1161 = vmatprep.subr.mxu0 0.0
        %1162 = vmatpush2.msra.mxu0 0.0
        %1163 = vmatprep.subr.mxu0 0.0
        %1164 = vmatpush2.msra.mxu0 0.0
        %1165 = vmatprep.subr.mxu0 0.0
        %1166 = vmatpush2.msra.mxu0 0.0
        %1167 = vmatprep.subr.mxu0 0.0
        %1168 = vmatpush2.msra.mxu0 0.0
        %1169 = vmatprep.subr.mxu0 0.0
        %1170 = vmatpush2.msra.mxu0 0.0
        %1171 = vmatprep.subr.mxu0 0.0
        %1172 = vmatpush2.msra.mxu0 0.0
        %1173 = vmatprep.subr.mxu0 0.0
        %1174 = vmatpush2.msra.mxu0 0.0
        %1175 = vmatprep.subr.mxu0 0.0
        %1176 = vmatpush2.msra.mxu0 0.0
        %1177 = vmatprep.subr.mxu0 0.0
        %1178 = vmatpush2.msra.mxu0 0.0
        %1179 = vmatprep.subr.mxu0 0.0
        %1180 = vmatpush2.msra.mxu0 0.0
        %1181 = vmatprep.subr.mxu0 0.0
        %1182 = vmatpush2.msra.mxu0 0.0
        %1183 = vmatprep.subr.mxu0 0.0
        %1184 = vmatpush2.msra.mxu0 0.0
        %1185 = vmatprep.mubr.f32.mxu0 0.0
        %1186 = vmatmul.mubr.f32.gmra.mxu0 %v1119
        %v1187 = vpop.f32.mrf.mxu0
        %v1188 = vadd.f32 0.0, %v1187
        %v1189 = vpop.f32.mrf.mxu0
        %1190 = vdwg.mxu0
        %1192 = vrot.lane.b32.xlu0 %v1188, 8
        %v1193 = vpop.permute.xlu0 %1192
        %vm1195 = vcmask 130112
        %1196 = vst.msk [vmem:[#allocation5] sm:$0xff] %vm1195, %v1193
        %v1197 = vld [vmem:[#allocation2] sm:$0xff]
        %v1198 = vld [vmem:[#allocation3] sm:$0xff]
        %v1199 = vld [vmem:[#allocation4] sm:$0xff]
        %1201 = vrot.lane.b32.xlu0 %v1197, 112
        %v1202 = vpop.permute.xlu0 %1201
        %1204 = vrot.lane.b32.xlu0 %v1198, 112
        %v1205 = vpop.permute.xlu0 %1204
        %v1206 = vsel %vm855, %v1202, 0
        %v1208 = vsel %vm855, %v1205, 0
        %1210 = vmatprep.subr.mxu0 0.0
        %1211 = vmatpush1.xpose.msra.mxu0 0.0
        %1212 = vmatprep.subr.mxu0 0.0
        %1213 = vmatpush1.xpose.msra.mxu0 0.0
        %1214 = vmatprep.subr.mxu0 0.0
        %1215 = vmatpush1.xpose.msra.mxu0 0.0
        %1216 = vmatprep.subr.mxu0 0.0
        %1217 = vmatpush1.xpose.msra.mxu0 0.0
        %1218 = vmatprep.subr.mxu0 0.0
        %1219 = vmatpush1.xpose.msra.mxu0 0.0
        %1220 = vmatprep.subr.mxu0 0.0
        %1221 = vmatpush1.xpose.msra.mxu0 0.0
        %1222 = vmatprep.subr.mxu0 0.0
        %1223 = vmatpush1.xpose.msra.mxu0 0.0
        %1224 = vmatprep.subr.mxu0 0.0
        %1225 = vmatpush1.xpose.msra.mxu0 0.0
        %1226 = vmatprep.subr.mxu0 0.0
        %1227 = vmatpush1.xpose.msra.mxu0 0.0
        %1228 = vmatprep.subr.mxu0 0.0
        %1229 = vmatpush1.xpose.msra.mxu0 0.0
        %1230 = vmatprep.subr.mxu0 0.0
        %1231 = vmatpush1.xpose.msra.mxu0 0.0
        %1232 = vmatprep.subr.mxu0 0.0
        %1233 = vmatpush1.xpose.msra.mxu0 0.0
        %1234 = vmatprep.subr.mxu0 0.0
        %1235 = vmatpush1.xpose.msra.mxu0 0.0
        %1236 = vmatprep.subr.mxu0 0.0
        %1237 = vmatpush1.xpose.msra.mxu0 0.0
        %1238 = vmatprep.subr.mxu0 0.0
        %1239 = vmatpush1.xpose.msra.mxu0 0.0
        %1240 = vmatprep.subr.mxu0 0.0
        %1241 = vmatpush1.xpose.msra.mxu0 %v1208
        %1242 = vmatprep.subr.mxu0 0.0
        %1243 = vmatpush2.xpose.msra.mxu0 0.0
        %1244 = vmatprep.subr.mxu0 0.0
        %1245 = vmatpush2.xpose.msra.mxu0 0.0
        %1246 = vmatprep.subr.mxu0 0.0
        %1247 = vmatpush2.xpose.msra.mxu0 0.0
        %1248 = vmatprep.subr.mxu0 0.0
        %1249 = vmatpush2.xpose.msra.mxu0 0.0
        %1250 = vmatprep.subr.mxu0 0.0
        %1251 = vmatpush2.xpose.msra.mxu0 0.0
        %1252 = vmatprep.subr.mxu0 0.0
        %1253 = vmatpush2.xpose.msra.mxu0 0.0
        %1254 = vmatprep.subr.mxu0 0.0
        %1255 = vmatpush2.xpose.msra.mxu0 0.0
        %1256 = vmatprep.subr.mxu0 0.0
        %1257 = vmatpush2.xpose.msra.mxu0 0.0
        %1258 = vmatprep.subr.mxu0 0.0
        %1259 = vmatpush2.xpose.msra.mxu0 0.0
        %1260 = vmatprep.subr.mxu0 0.0
        %1261 = vmatpush2.xpose.msra.mxu0 0.0
        %1262 = vmatprep.subr.mxu0 0.0
        %1263 = vmatpush2.xpose.msra.mxu0 0.0
        %1264 = vmatprep.subr.mxu0 0.0
        %1265 = vmatpush2.xpose.msra.mxu0 0.0
        %1266 = vmatprep.subr.mxu0 0.0
        %1267 = vmatpush2.xpose.msra.mxu0 0.0
        %1268 = vmatprep.subr.mxu0 0.0
        %1269 = vmatpush2.xpose.msra.mxu0 0.0
        %1270 = vmatprep.subr.mxu0 0.0
        %1271 = vmatpush2.xpose.msra.mxu0 0.0
        %1272 = vmatprep.subr.mxu0 0.0
        %1273 = vmatpush2.xpose.msra.mxu0 0.0
        %1274 = vmatprep.mubr.f32.mxu0 0.0
        %1275 = vmatmul.mubr.f32.gmra.mxu0 %v1206
        %v1276 = vpop.f32.mrf.mxu0
        %v1277 = vadd.f32 0.0, %v1276
        %v1278 = vpop.f32.mrf.mxu0
        %1279 = vdwg.mxu0
        %v1280 = vsel %vm855, %v1277, -inf
        %1281 = vmax.xlane.f32.xlu0 %v1280
        %v1282 = vpop.xlane.xlu0 %1281
        %v1283 = vsub.f32 %v1277, %v1282
        %v1284 = vmul.f32 %v1283, 1.442695
        %v1285 = vpow.pop %v1284
        %v1286 = vsel %vm855, %v1285, 0.0
        %1287 = vadd.xlane.f32.xlu0 %v1286
        %v1288 = vpop.xlane.xlu0 %1287
        %v1289 = vrcp.pop %v1288
        %v1290 = vmul.f32 %v1285, %v1289
        %s1291 = scalar_lea.vmem %s587, 16 [#allocation19]
        %1292 = vst.msk [vmem:[%s1291] sm:$0xff] %vm855, %v1290
        %1294 = vrot.lane.b32.xlu0 %v1199, 112
        %v1295 = vpop.permute.xlu0 %1294
        %v1298 = vsel %vm855, %v1290, 0
        %1300 = vmatprep.subr.mxu0 0.0
        %1301 = vmatpush1.msra.mxu0 0.0
        %1302 = vmatprep.subr.mxu0 0.0
        %1303 = vmatpush1.msra.mxu0 0.0
        %1304 = vmatprep.subr.mxu0 0.0
        %1305 = vmatpush1.msra.mxu0 0.0
        %1306 = vmatprep.subr.mxu0 0.0
        %1307 = vmatpush1.msra.mxu0 0.0
        %1308 = vmatprep.subr.mxu0 0.0
        %1309 = vmatpush1.msra.mxu0 0.0
        %1310 = vmatprep.subr.mxu0 0.0
        %1311 = vmatpush1.msra.mxu0 0.0
        %1312 = vmatprep.subr.mxu0 0.0
        %1313 = vmatpush1.msra.mxu0 0.0
        %1314 = vmatprep.subr.mxu0 0.0
        %1315 = vmatpush1.msra.mxu0 0.0
        %1316 = vmatprep.subr.mxu0 0.0
        %1317 = vmatpush1.msra.mxu0 0.0
        %1318 = vmatprep.subr.mxu0 0.0
        %1319 = vmatpush1.msra.mxu0 0.0
        %1320 = vmatprep.subr.mxu0 0.0
        %1321 = vmatpush1.msra.mxu0 0.0
        %1322 = vmatprep.subr.mxu0 0.0
        %1323 = vmatpush1.msra.mxu0 0.0
        %1324 = vmatprep.subr.mxu0 0.0
        %1325 = vmatpush1.msra.mxu0 0.0
        %1326 = vmatprep.subr.mxu0 0.0
        %1327 = vmatpush1.msra.mxu0 0.0
        %1328 = vmatprep.subr.mxu0 0.0
        %1329 = vmatpush1.msra.mxu0 0.0
        %1330 = vmatprep.subr.mxu0 0.0
        %1331 = vmatpush1.msra.mxu0 %v1295
        %1332 = vmatprep.subr.mxu0 0.0
        %1333 = vmatpush2.msra.mxu0 0.0
        %1334 = vmatprep.subr.mxu0 0.0
        %1335 = vmatpush2.msra.mxu0 0.0
        %1336 = vmatprep.subr.mxu0 0.0
        %1337 = vmatpush2.msra.mxu0 0.0
        %1338 = vmatprep.subr.mxu0 0.0
        %1339 = vmatpush2.msra.mxu0 0.0
        %1340 = vmatprep.subr.mxu0 0.0
        %1341 = vmatpush2.msra.mxu0 0.0
        %1342 = vmatprep.subr.mxu0 0.0
        %1343 = vmatpush2.msra.mxu0 0.0
        %1344 = vmatprep.subr.mxu0 0.0
        %1345 = vmatpush2.msra.mxu0 0.0
        %1346 = vmatprep.subr.mxu0 0.0
        %1347 = vmatpush2.msra.mxu0 0.0
        %1348 = vmatprep.subr.mxu0 0.0
        %1349 = vmatpush2.msra.mxu0 0.0
        %1350 = vmatprep.subr.mxu0 0.0
        %1351 = vmatpush2.msra.mxu0 0.0
        %1352 = vmatprep.subr.mxu0 0.0
        %1353 = vmatpush2.msra.mxu0 0.0
        %1354 = vmatprep.subr.mxu0 0.0
        %1355 = vmatpush2.msra.mxu0 0.0
        %1356 = vmatprep.subr.mxu0 0.0
        %1357 = vmatpush2.msra.mxu0 0.0
        %1358 = vmatprep.subr.mxu0 0.0
        %1359 = vmatpush2.msra.mxu0 0.0
        %1360 = vmatprep.subr.mxu0 0.0
        %1361 = vmatpush2.msra.mxu0 0.0
        %1362 = vmatprep.subr.mxu0 0.0
        %1363 = vmatpush2.msra.mxu0 0.0
        %1364 = vmatprep.mubr.f32.mxu0 0.0
        %1365 = vmatmul.mubr.f32.gmra.mxu0 %v1298
        %v1366 = vpop.f32.mrf.mxu0
        %v1367 = vadd.f32 0.0, %v1366
        %v1368 = vpop.f32.mrf.mxu0
        %1369 = vdwg.mxu0
        %1371 = vrot.lane.b32.xlu0 %v1367, 16
        %v1372 = vpop.permute.xlu0 %1371
        %vm1374 = vcmask 195712
        %1375 = vst.msk [vmem:[#allocation5] sm:$0xff] %vm1374, %v1372
        %v1376 = vld [vmem:[#allocation2] sm:$0xff]
        %v1377 = vld [vmem:[#allocation3] sm:$0xff]
        %v1378 = vld [vmem:[#allocation4] sm:$0xff]
        %1380 = vrot.lane.b32.xlu0 %v1376, 104
        %v1381 = vpop.permute.xlu0 %1380
        %1383 = vrot.lane.b32.xlu0 %v1377, 104
        %v1384 = vpop.permute.xlu0 %1383
        %v1385 = vsel %vm855, %v1381, 0
        %v1387 = vsel %vm855, %v1384, 0
        %1389 = vmatprep.subr.mxu0 0.0
        %1390 = vmatpush1.xpose.msra.mxu0 0.0
        %1391 = vmatprep.subr.mxu0 0.0
        %1392 = vmatpush1.xpose.msra.mxu0 0.0
        %1393 = vmatprep.subr.mxu0 0.0
        %1394 = vmatpush1.xpose.msra.mxu0 0.0
        %1395 = vmatprep.subr.mxu0 0.0
        %1396 = vmatpush1.xpose.msra.mxu0 0.0
        %1397 = vmatprep.subr.mxu0 0.0
        %1398 = vmatpush1.xpose.msra.mxu0 0.0
        %1399 = vmatprep.subr.mxu0 0.0
        %1400 = vmatpush1.xpose.msra.mxu0 0.0
        %1401 = vmatprep.subr.mxu0 0.0
        %1402 = vmatpush1.xpose.msra.mxu0 0.0
        %1403 = vmatprep.subr.mxu0 0.0
        %1404 = vmatpush1.xpose.msra.mxu0 0.0
        %1405 = vmatprep.subr.mxu0 0.0
        %1406 = vmatpush1.xpose.msra.mxu0 0.0
        %1407 = vmatprep.subr.mxu0 0.0
        %1408 = vmatpush1.xpose.msra.mxu0 0.0
        %1409 = vmatprep.subr.mxu0 0.0
        %1410 = vmatpush1.xpose.msra.mxu0 0.0
        %1411 = vmatprep.subr.mxu0 0.0
        %1412 = vmatpush1.xpose.msra.mxu0 0.0
        %1413 = vmatprep.subr.mxu0 0.0
        %1414 = vmatpush1.xpose.msra.mxu0 0.0
        %1415 = vmatprep.subr.mxu0 0.0
        %1416 = vmatpush1.xpose.msra.mxu0 0.0
        %1417 = vmatprep.subr.mxu0 0.0
        %1418 = vmatpush1.xpose.msra.mxu0 0.0
        %1419 = vmatprep.subr.mxu0 0.0
        %1420 = vmatpush1.xpose.msra.mxu0 %v1387
        %1421 = vmatprep.subr.mxu0 0.0
        %1422 = vmatpush2.xpose.msra.mxu0 0.0
        %1423 = vmatprep.subr.mxu0 0.0
        %1424 = vmatpush2.xpose.msra.mxu0 0.0
        %1425 = vmatprep.subr.mxu0 0.0
        %1426 = vmatpush2.xpose.msra.mxu0 0.0
        %1427 = vmatprep.subr.mxu0 0.0
        %1428 = vmatpush2.xpose.msra.mxu0 0.0
        %1429 = vmatprep.subr.mxu0 0.0
        %1430 = vmatpush2.xpose.msra.mxu0 0.0
        %1431 = vmatprep.subr.mxu0 0.0
        %1432 = vmatpush2.xpose.msra.mxu0 0.0
        %1433 = vmatprep.subr.mxu0 0.0
        %1434 = vmatpush2.xpose.msra.mxu0 0.0
        %1435 = vmatprep.subr.mxu0 0.0
        %1436 = vmatpush2.xpose.msra.mxu0 0.0
        %1437 = vmatprep.subr.mxu0 0.0
        %1438 = vmatpush2.xpose.msra.mxu0 0.0
        %1439 = vmatprep.subr.mxu0 0.0
        %1440 = vmatpush2.xpose.msra.mxu0 0.0
        %1441 = vmatprep.subr.mxu0 0.0
        %1442 = vmatpush2.xpose.msra.mxu0 0.0
        %1443 = vmatprep.subr.mxu0 0.0
        %1444 = vmatpush2.xpose.msra.mxu0 0.0
        %1445 = vmatprep.subr.mxu0 0.0
        %1446 = vmatpush2.xpose.msra.mxu0 0.0
        %1447 = vmatprep.subr.mxu0 0.0
        %1448 = vmatpush2.xpose.msra.mxu0 0.0
        %1449 = vmatprep.subr.mxu0 0.0
        %1450 = vmatpush2.xpose.msra.mxu0 0.0
        %1451 = vmatprep.subr.mxu0 0.0
        %1452 = vmatpush2.xpose.msra.mxu0 0.0
        %1453 = vmatprep.mubr.f32.mxu0 0.0
        %1454 = vmatmul.mubr.f32.gmra.mxu0 %v1385
        %v1455 = vpop.f32.mrf.mxu0
        %v1456 = vadd.f32 0.0, %v1455
        %v1457 = vpop.f32.mrf.mxu0
        %1458 = vdwg.mxu0
        %v1459 = vsel %vm855, %v1456, -inf
        %1460 = vmax.xlane.f32.xlu0 %v1459
        %v1461 = vpop.xlane.xlu0 %1460
        %v1462 = vsub.f32 %v1456, %v1461
        %v1463 = vmul.f32 %v1462, 1.442695
        %v1464 = vpow.pop %v1463
        %v1465 = vsel %vm855, %v1464, 0.0
        %1466 = vadd.xlane.f32.xlu0 %v1465
        %v1467 = vpop.xlane.xlu0 %1466
        %v1468 = vrcp.pop %v1467
        %v1469 = vmul.f32 %v1464, %v1468
        %s1470 = scalar_lea.vmem %s587, 24 [#allocation19]
        %1471 = vst.msk [vmem:[%s1470] sm:$0xff] %vm855, %v1469
        %1473 = vrot.lane.b32.xlu0 %v1378, 104
        %v1474 = vpop.permute.xlu0 %1473
        %v1477 = vsel %vm855, %v1469, 0
        %1479 = vmatprep.subr.mxu0 0.0
        %1480 = vmatpush1.msra.mxu0 0.0
        %1481 = vmatprep.subr.mxu0 0.0
        %1482 = vmatpush1.msra.mxu0 0.0
        %1483 = vmatprep.subr.mxu0 0.0
        %1484 = vmatpush1.msra.mxu0 0.0
        %1485 = vmatprep.subr.mxu0 0.0
        %1486 = vmatpush1.msra.mxu0 0.0
        %1487 = vmatprep.subr.mxu0 0.0
        %1488 = vmatpush1.msra.mxu0 0.0
        %1489 = vmatprep.subr.mxu0 0.0
        %1490 = vmatpush1.msra.mxu0 0.0
        %1491 = vmatprep.subr.mxu0 0.0
        %1492 = vmatpush1.msra.mxu0 0.0
        %1493 = vmatprep.subr.mxu0 0.0
        %1494 = vmatpush1.msra.mxu0 0.0
        %1495 = vmatprep.subr.mxu0 0.0
        %1496 = vmatpush1.msra.mxu0 0.0
        %1497 = vmatprep.subr.mxu0 0.0
        %1498 = vmatpush1.msra.mxu0 0.0
        %1499 = vmatprep.subr.mxu0 0.0
        %1500 = vmatpush1.msra.mxu0 0.0
        %1501 = vmatprep.subr.mxu0 0.0
        %1502 = vmatpush1.msra.mxu0 0.0
        %1503 = vmatprep.subr.mxu0 0.0
        %1504 = vmatpush1.msra.mxu0 0.0
        %1505 = vmatprep.subr.mxu0 0.0
        %1506 = vmatpush1.msra.mxu0 0.0
        %1507 = vmatprep.subr.mxu0 0.0
        %1508 = vmatpush1.msra.mxu0 0.0
        %1509 = vmatprep.subr.mxu0 0.0
        %1510 = vmatpush1.msra.mxu0 %v1474
        %1511 = vmatprep.subr.mxu0 0.0
        %1512 = vmatpush2.msra.mxu0 0.0
        %1513 = vmatprep.subr.mxu0 0.0
        %1514 = vmatpush2.msra.mxu0 0.0
        %1515 = vmatprep.subr.mxu0 0.0
        %1516 = vmatpush2.msra.mxu0 0.0
        %1517 = vmatprep.subr.mxu0 0.0
        %1518 = vmatpush2.msra.mxu0 0.0
        %1519 = vmatprep.subr.mxu0 0.0
        %1520 = vmatpush2.msra.mxu0 0.0
        %1521 = vmatprep.subr.mxu0 0.0
        %1522 = vmatpush2.msra.mxu0 0.0
        %1523 = vmatprep.subr.mxu0 0.0
        %1524 = vmatpush2.msra.mxu0 0.0
        %1525 = vmatprep.subr.mxu0 0.0
        %1526 = vmatpush2.msra.mxu0 0.0
        %1527 = vmatprep.subr.mxu0 0.0
        %1528 = vmatpush2.msra.mxu0 0.0
        %1529 = vmatprep.subr.mxu0 0.0
        %1530 = vmatpush2.msra.mxu0 0.0
        %1531 = vmatprep.subr.mxu0 0.0
        %1532 = vmatpush2.msra.mxu0 0.0
        %1533 = vmatprep.subr.mxu0 0.0
        %1534 = vmatpush2.msra.mxu0 0.0
        %1535 = vmatprep.subr.mxu0 0.0
        %1536 = vmatpush2.msra.mxu0 0.0
        %1537 = vmatprep.subr.mxu0 0.0
        %1538 = vmatpush2.msra.mxu0 0.0
        %1539 = vmatprep.subr.mxu0 0.0
        %1540 = vmatpush2.msra.mxu0 0.0
        %1541 = vmatprep.subr.mxu0 0.0
        %1542 = vmatpush2.msra.mxu0 0.0
        %1543 = vmatprep.mubr.f32.mxu0 0.0
        %1544 = vmatmul.mubr.f32.gmra.mxu0 %v1477
        %v1545 = vpop.f32.mrf.mxu0
        %v1546 = vadd.f32 0.0, %v1545
        %v1547 = vpop.f32.mrf.mxu0
        %1548 = vdwg.mxu0
        %1550 = vrot.lane.b32.xlu0 %v1546, 24
        %v1551 = vpop.permute.xlu0 %1550
        %vm1553 = vcmask 261312
        %1554 = vst.msk [vmem:[#allocation5] sm:$0xff] %vm1553, %v1551
        %v1555 = vld [vmem:[#allocation5] sm:$0xff]
        %v1556 = vld [vmem:[#allocation17] sm:$0xff]
        %v1557 = vld [vmem:[#allocation17 + $0x8] sm:$0xff]
        %v1558 = vld [vmem:[#allocation17 + $0x10] sm:$0xff]
        %v1559 = vld [vmem:[#allocation17 + $0x18] sm:$0xff]
        %v1560 = vld [vmem:[%s10] sm:$0x1]
        %v1562 = vlaneseq
        %v1563 = vshrl.u32 %v1562, 7
        %v1564 = vsub.s32 0, %v1563
        %v1565 = vrot.slane %v1560, %v1564
        %v1568 = vsel %vm600, %v1555, 0
        %1570 = vmatprep.subr.mxu0 0.0
        %1571 = vmatpush1.msra.mxu0 0.0
        %1572 = vmatprep.subr.mxu0 0.0
        %1573 = vmatpush1.msra.mxu0 0.0
        %1574 = vmatprep.subr.mxu0 0.0
        %1575 = vmatpush1.msra.mxu0 0.0
        %1576 = vmatprep.subr.mxu0 0.0
        %1577 = vmatpush1.msra.mxu0 0.0
        %1578 = vmatprep.subr.mxu0 0.0
        %1579 = vmatpush1.msra.mxu0 0.0
        %1580 = vmatprep.subr.mxu0 0.0
        %1581 = vmatpush1.msra.mxu0 0.0
        %1582 = vmatprep.subr.mxu0 0.0
        %1583 = vmatpush1.msra.mxu0 0.0
        %1584 = vmatprep.subr.mxu0 0.0
        %1585 = vmatpush1.msra.mxu0 0.0
        %1586 = vmatprep.subr.mxu0 0.0
        %1587 = vmatpush1.msra.mxu0 0.0
        %1588 = vmatprep.subr.mxu0 0.0
        %1589 = vmatpush1.msra.mxu0 0.0
        %1590 = vmatprep.subr.mxu0 0.0
        %1591 = vmatpush1.msra.mxu0 0.0
        %1592 = vmatprep.subr.mxu0 0.0
        %1593 = vmatpush1.msra.mxu0 0.0
        %1594 = vmatprep.subr.mxu0 0.0
        %1595 = vmatpush1.msra.mxu0 %v1559
        %1596 = vmatprep.subr.mxu0 0.0
        %1597 = vmatpush1.msra.mxu0 %v1558
        %1598 = vmatprep.subr.mxu0 0.0
        %1599 = vmatpush1.msra.mxu0 %v1557
        %1600 = vmatprep.subr.mxu0 0.0
        %1601 = vmatpush1.msra.mxu0 %v1556
        %1602 = vmatprep.subr.mxu0 0.0
        %1603 = vmatpush2.msra.mxu0 0.0
        %1604 = vmatprep.subr.mxu0 0.0
        %1605 = vmatpush2.msra.mxu0 0.0
        %1606 = vmatprep.subr.mxu0 0.0
        %1607 = vmatpush2.msra.mxu0 0.0
        %1608 = vmatprep.subr.mxu0 0.0
        %1609 = vmatpush2.msra.mxu0 0.0
        %1610 = vmatprep.subr.mxu0 0.0
        %1611 = vmatpush2.msra.mxu0 0.0
        %1612 = vmatprep.subr.mxu0 0.0
        %1613 = vmatpush2.msra.mxu0 0.0
        %1614 = vmatprep.subr.mxu0 0.0
        %1615 = vmatpush2.msra.mxu0 0.0
        %1616 = vmatprep.subr.mxu0 0.0
        %1617 = vmatpush2.msra.mxu0 0.0
        %1618 = vmatprep.subr.mxu0 0.0
        %1619 = vmatpush2.msra.mxu0 0.0
        %1620 = vmatprep.subr.mxu0 0.0
        %1621 = vmatpush2.msra.mxu0 0.0
        %1622 = vmatprep.subr.mxu0 0.0
        %1623 = vmatpush2.msra.mxu0 0.0
        %1624 = vmatprep.subr.mxu0 0.0
        %1625 = vmatpush2.msra.mxu0 0.0
        %1626 = vmatprep.subr.mxu0 0.0
        %1627 = vmatpush2.msra.mxu0 0.0
        %1628 = vmatprep.subr.mxu0 0.0
        %1629 = vmatpush2.msra.mxu0 0.0
        %1630 = vmatprep.subr.mxu0 0.0
        %1631 = vmatpush2.msra.mxu0 0.0
        %1632 = vmatprep.subr.mxu0 0.0
        %1633 = vmatpush2.msra.mxu0 0.0
        %1634 = vmatprep.mubr.f32.mxu0 0.0
        %1635 = vmatmul.mubr.f32.gmra.mxu0 %v1568
        %v1636 = vpop.f32.mrf.mxu0
        %v1637 = vadd.f32 %v1565, %v1636
        %v1638 = vpop.f32.mrf.mxu0
        %1639 = vdwg.mxu0
        %1640 = vst.msk [vmem:[%s580] sm:$0xff] %vm600, %v1637
        %s1641 = sand.u32 %s308, 1
        %s1642 = scalar_lea.sflag [#allocation8], %s1641
        %s1643 = sand.u32 %s308, 1
        %s1644 = smul.addr %s1643, 8
        %s1645 = scalar_lea.vmem [#allocation18], %s1644
        %s1646 = sand.u32 %s336, 1
        %s1647 = scalar_lea.sflag [#allocation20], %s1646
        %s1648 = sand.u32 %s336, 1
        %s1649 = smul.addr %s1648, 32
        %s1650 = scalar_lea.vmem [#allocation19], %s1649
        // Predicated region
        $region97: #{tpu_custom_call.1} parent=63 // pred_check
          %p1651 = pneg %p318
        $region98: #{tpu_custom_call.1} parent=63 // pred_check_branch
          %1653 = sbr.rel (%p1651) target = $region100
        $region99: #{tpu_custom_call.1} parent=63 // pred_region
          %s1655 = ssub.s32 128, 128
          %1656 = vsyncadd %s1642, %s1655
          %s1657 = sadd.s32 %s43, %s42
          %s1658 = smul.addr %s1657, 128
          %s1659 = scalar_lea.hbm %s11, %s1658
          %s1661 = sshll.u32 %s1645, 4
          %s1662 = int_to_ptr.vmem [resolvable:$true] %s1661
          %1664 = dma.vmem_to_hbm [thread:$0]  %s1662, 128, %s1659, %s1642
        $region100: #{tpu_custom_call.1} parent=63 // pred_fallthru
          _
        // Predicated region
        $region101: #{tpu_custom_call.1} parent=63 // pred_check
          %p1665 = pneg %p346
        $region102: #{tpu_custom_call.1} parent=63 // pred_check_branch
          %1667 = sbr.rel (%p1665) target = $region104
        $region103: #{tpu_custom_call.1} parent=63 // pred_region
          %s1669 = ssub.s32 512, 512
          %1670 = vsyncadd %s1647, %s1669
          %s1671 = smul.addr %s42, 4
          %s1672 = sadd.s32 %s43, %s1671
          %s1673 = smul.addr %s1672, 128
          %s1674 = scalar_lea.hbm %s12, %s1673
          %s1675 = sshll.u32 %s1650, 4
          %s1676 = int_to_ptr.vmem [resolvable:$true] %s1675
          %1681 = dma.vmem_to_hbm [thread:$0]  %s1676, 512, %s1674, %s1647, 128, 128, 8
        $region104: #{tpu_custom_call.1} parent=63 // pred_fallthru
          _
      $region64: #{tpu_custom_call.1} parent=5 // pred_fallthru
        _
      %p1682 = scmp.le.s32.totalorder 2, %s33
      // Predicated region
      $region105: #{tpu_custom_call.1} parent=5 // pred_check
        %p1683 = pneg %p1682
      $region106: #{tpu_custom_call.1} parent=5 // pred_check_branch
        %1685 = sbr.rel (%p1683) target = $region108
      $region107: #{tpu_custom_call.1} parent=5 // pred_region
        %s1686 = ssub.s32 %s33, 2
        // Predicated region
        $region109: #{tpu_custom_call.1} parent=107 // pred_check
          %p1687 = pneg %p324
        $region110: #{tpu_custom_call.1} parent=107 // pred_check_branch
          %1689 = sbr.rel (%p1687) target = $region112
        $region111: #{tpu_custom_call.1} parent=107 // pred_region
          %s1690 = sand.u32 %s309, 1
          %s1691 = scalar_lea.sflag [#allocation8], %s1690
          %s1692 = sand.u32 %s309, 1
          %s1693 = smul.addr %s1692, 8
          %s1694 = scalar_lea.vmem [#allocation18], %s1693
          %1695 = dma.done %s1691, 128
        $region112: #{tpu_custom_call.1} parent=107 // pred_fallthru
          _
        // Predicated region
        $region113: #{tpu_custom_call.1} parent=107 // pred_check
          %p1696 = pneg %p352
        $region114: #{tpu_custom_call.1} parent=107 // pred_check_branch
          %1698 = sbr.rel (%p1696) target = $region116
        $region115: #{tpu_custom_call.1} parent=107 // pred_region
          %s1699 = sand.u32 %s337, 1
          %s1700 = scalar_lea.sflag [#allocation20], %s1699
          %s1701 = sand.u32 %s337, 1
          %s1702 = smul.addr %s1701, 32
          %s1703 = scalar_lea.vmem [#allocation19], %s1702
          %1704 = dma.done %s1700, 512
        $region116: #{tpu_custom_call.1} parent=107 // pred_fallthru
          _
      $region108: #{tpu_custom_call.1} parent=5 // pred_fallthru
        _
    $region6: #{tpu_custom_call.1} parent=1 // loop_footer
      %s37 = sadd.s32 1, %s33
    $region7: #{tpu_custom_call.1} parent=1 // loop_footer_branch
      %32 = sbr.rel target = $region3
    $region8: #{tpu_custom_call.1} parent=1 // loop_exit
      _
    %1705 = vsyncpa [#allocation7], 1
    %s1706 = scalar_lea.sflag [#allocation7], 1
    %1707 = vsyncpa %s1706, 1
    %1708 = vsyncpa [#allocation10], 1
    %s1709 = scalar_lea.sflag [#allocation10], 1
    %1710 = vsyncpa %s1709, 1
    %1711 = vsyncpa [#allocation13], 1
    %1712 = vsyncpa [#allocation16], 1
    %1713 = vsyncpa [#allocation8], 1
    %s1714 = scalar_lea.sflag [#allocation8], 1
    %1715 = vsyncpa %s1714, 1
    %1716 = vsyncpa [#allocation20], 1
    %s1717 = scalar_lea.sflag [#allocation20], 1
    %1718 = vsyncpa %s1717, 1

</llo_original>
